<compile_context>
chip_gen: v7x
topology: tpu7x:2x2x1
jax: 0.10.0
libtpu: 0.0.40
codegen_flags: <defaults>
</compile_context>

<pallas_src>
import functools
import numpy as np
import jax
import jax.numpy as jnp
from jax.experimental import pallas as pl
from jax.experimental.pallas import tpu as pltpu


# ------------------------------- config --------------------------------------

IN_CHANNELS = 16
HEAD_CONV = 32
CLASSES = 3
NUM_KPT = 10
INIT_P = 0.01
REGRESSION_HEADS = [['2d_dim', '3d_offset'], ['3d_dim', 'depth']]
REGRESSION_CHANNELS = [[4, 2], [3, 1]]

NUM_REG = sum(sum(g) for g in REGRESSION_CHANNELS)          # 10
NUM_SIG = CLASSES + NUM_KPT                                 # 13 columns get sigmoid_hm
C_OUT_TOTAL = NUM_SIG + NUM_REG                             # 23 real output channels
FEAT3 = 3 * HEAD_CONV                                       # 96 stacked stem features
C_OUT_PAD = 128                                             # pad 1x1 N to a full lane tile
                                                            # (free on MXU, aligns transpose)


# ----------------------------- Pallas kernel ----------------------------------

def _fused_predictor_kernel(xpad_ref, w3_ref, w1_ref, b_ref, o_ref,
                            *, H, W, num_sig, c_out):
    """Fused detector head for one batch element.

    xpad_ref: (1, H+2, W+2, Cin)  f32  zero-padded NHWC input tile
    w3_ref:   (9*Cin, F3)         bf16 stacked im2col 3x3 weights (cls|kpt|reg stems)
    w1_ref:   (F3, C_OUT_PAD)     bf16 block-diagonal 1x1 weights (zero padded cols)
    b_ref:    (1, C_OUT_PAD)      f32  fused 1x1 biases
    o_ref:    (1, c_out, H*W)     f32  lane-dense output (channels x pixels)
    """
    Cin = xpad_ref.shape[3]

    # --- im2col: one (HW, 9*Cin) patch matrix (column order = dy, dx, cin) -----
    patches = jnp.concatenate(
        [xpad_ref[0, dy:dy + H, dx:dx + W, :].reshape(H * W, Cin)
         for dy in range(3) for dx in range(3)],
        axis=-1)                                                     # (HW, 144) f32

    # --- fused 3x3 stems (single K=144 matmul) + ReLU --------------------------
    feat = jnp.dot(patches.astype(jnp.bfloat16), w3_ref[...],
                   preferred_element_type=jnp.float32)               # (HW, 96) f32
    feat = jnp.maximum(feat, 0.0)

    # --- fused block-diagonal 1x1 heads + bias ---------------------------------
    y = jnp.dot(feat.astype(jnp.bfloat16), w1_ref[...],
                preferred_element_type=jnp.float32)                  # (HW, 128) f32
    y = y + b_ref[...]

    # --- sigmoid_hm (sigmoid + clamp) on cls/kpt columns only ------------------
    col = jax.lax.broadcasted_iota(jnp.int32, y.shape, 1)
    y_sig = jnp.clip(jax.nn.sigmoid(y), 1e-4, 1.0 - 1e-4)
    y = jnp.where(col < num_sig, y_sig, y)

    # --- lane-dense store: aligned (HW,128)->(128,HW) transpose, keep 23 rows --
    o_ref[0] = y.T[:c_out, :].astype(o_ref.dtype)


# -------------------------------- wrapper --------------------------------------

def predictor_forward(params, features_nchw):
    B, Cin, H, W = features_nchw.shape
    x = jnp.transpose(features_nchw, (0, 2, 3, 1)).astype(jnp.float32)   # NCHW -> NHWC
    # Single tiny halo pad of the input (only one conv3x3 read remains after fusion).
    xpad = jnp.pad(x, ((0, 0), (1, 1), (1, 1), (0, 0)))

    w3 = params['w3_flat'].astype(jnp.bfloat16)       # (144, 96)
    w1 = params['w1_block'].astype(jnp.bfloat16)      # (96, 128)
    bias = params['b_block']                          # (1, 128) f32

    kern = functools.partial(_fused_predictor_kernel, H=H, W=W,
                             num_sig=NUM_SIG, c_out=C_OUT_TOTAL)

    out = pl.pallas_call(
        kern,
        out_shape=jax.ShapeDtypeStruct((B, C_OUT_TOTAL, H * W), jnp.float32),
        grid=(B,),
        in_specs=[
            pl.BlockSpec((1, H + 2, W + 2, Cin), lambda i: (i, 0, 0, 0)),
            pl.BlockSpec((9 * Cin, FEAT3), lambda i: (0, 0)),
            pl.BlockSpec((FEAT3, C_OUT_PAD), lambda i: (0, 0)),
            pl.BlockSpec((1, C_OUT_PAD), lambda i: (0, 0)),
        ],
        out_specs=pl.BlockSpec((1, C_OUT_TOTAL, H * W), lambda i: (i, 0, 0)),
        compiler_params=pltpu.CompilerParams(
            dimension_semantics=("parallel",)),       # one image per TC on v7x
    )(xpad, w3, w1, bias)

    out = out.reshape(B, C_OUT_TOTAL, H, W)           # already NCHW-ordered, free reshape
    # TODO(synk): edge-fusion branch (F.grid_sample gather + per-sample scatter-add
    # into output_cls / 3d_offset) is config-disabled here and not implemented.
    return {
        'cls': out[:, :CLASSES],
        'hm_kpt': out[:, CLASSES:NUM_SIG],
        'reg': out[:, NUM_SIG:],
    }


# --------------------------- parameter construction ----------------------------

def pack_params(raw):
    """Pack per-head (PyTorch-style) weights into the fused kernel operands."""
    # Stacked 3x3 stems -> im2col layout (9*Cin, 96); feature cols: [cls | kpt | reg].
    w3 = jnp.concatenate([raw['cls_w1'], raw['kpt_w1'], raw['reg_feat_w']], axis=-1)
    w3_flat = w3.reshape(9 * IN_CHANNELS, FEAT3)

    # Block-diagonal fused 1x1: rows = stacked stem feature, cols = output channel.
    w1 = np.zeros((FEAT3, C_OUT_PAD), np.float32)
    b = np.zeros((C_OUT_PAD,), np.float32)
    w1[0:HEAD_CONV, 0:CLASSES] = np.asarray(raw['cls_w2'])
    b[0:CLASSES] = np.asarray(raw['cls_b2'])
    w1[HEAD_CONV:2 * HEAD_CONV, CLASSES:NUM_SIG] = np.asarray(raw['kpt_w2'])
    b[CLASSES:NUM_SIG] = np.asarray(raw['kpt_b2'])
    col = NUM_SIG
    for (w, bb) in raw['reg_heads']:                   # order: 4, 2, 3, 1 channels
        ch = w.shape[1]
        w1[2 * HEAD_CONV:3 * HEAD_CONV, col:col + ch] = np.asarray(w)
        b[col:col + ch] = np.asarray(bb)
        col += ch
    return {
        'w3_flat': w3_flat,
        'w1_block': jnp.asarray(w1),
        'b_block': jnp.asarray(b).reshape(1, C_OUT_PAD),
    }


def init_params(key):
    ks = iter(jax.random.split(key, 16))
    init_bias = float(-np.log(1.0 / INIT_P - 1.0))     # class / kpt final-conv bias fill

    def w3x3(k, cin, cout):
        return (jax.random.normal(k, (3, 3, cin, cout), jnp.float32)
                * (1.0 / np.sqrt(9 * cin)))

    def w1x1(k, cin, cout):
        return (jax.random.normal(k, (cin, cout), jnp.float32)
                * (1.0 / np.sqrt(cin)))

    raw = {
        'cls_w1': w3x3(next(ks), IN_CHANNELS, HEAD_CONV),
        'cls_w2': w1x1(next(ks), HEAD_CONV, CLASSES),
        'cls_b2': jnp.full((CLASSES,), init_bias, jnp.float32),
        'kpt_w1': w3x3(next(ks), IN_CHANNELS, HEAD_CONV),
        'kpt_w2': w1x1(next(ks), HEAD_CONV, NUM_KPT),
        'kpt_b2': jnp.full((NUM_KPT,), init_bias, jnp.float32),
        # only reg_features[0] is used in forward (SEPRATE_DEPTH_CHANNELS=False)
        'reg_feat_w': w3x3(next(ks), IN_CHANNELS, HEAD_CONV),
        'reg_heads': [(w1x1(next(ks), HEAD_CONV, ch), jnp.zeros((ch,), jnp.float32))
                      for grp in REGRESSION_CHANNELS for ch in grp],  # _fill_fc_weights(,0)
    }
    return pack_params(raw)


# ----------------------------------- main ---------------------------------------

if __name__ == "__main__":
    key = jax.random.PRNGKey(0)
    k_param, k_x = jax.random.split(key)
    params = init_params(k_param)

    B, C, H, W = 2, IN_CHANNELS, 16, 16
    features = jax.random.normal(k_x, (B, C, H, W), jnp.float32)   # NCHW like PyTorch

    fwd = jax.jit(lambda f: predictor_forward(params, f))
    out = fwd(features)
    jax.block_until_ready(out)

    assert out['cls'].shape == (B, CLASSES, H, W)
    assert out['hm_kpt'].shape == (B, NUM_KPT, H, W)
    assert out['reg'].shape == (B, NUM_REG, H, W)
    assert float(jnp.min(out['cls'])) >= 1e-4 and float(jnp.max(out['cls'])) <= 1 - 1e-4
    assert float(jnp.min(out['hm_kpt'])) >= 1e-4 and float(jnp.max(out['hm_kpt'])) <= 1 - 1e-4

    print("KERNEL_OK")
</pallas_src>

<mosaic_0001>
module attributes {stable_mosaic.version = 11 : i64} {
  func.func @_fused_predictor_kernel(%arg0: i32, %arg1: memref<1x18x18x16xf32, #tpu.memory_space<vmem>>, %arg2: memref<144x96xbf16, #tpu.memory_space<vmem>>, %arg3: memref<96x128xbf16, #tpu.memory_space<vmem>>, %arg4: memref<1x128xf32, #tpu.memory_space<vmem>>, %arg5: memref<1x23x256xf32, #tpu.memory_space<vmem>>) attributes {dimension_semantics = [#tpu.dimension_semantics<parallel>], iteration_bounds = array<i64: 2>, scalar_prefetch = 0 : i64, scratch_operands = 0 : i64, tpu.core_type = #tpu.core_type<tc>, window_params = [{transform_indices = @transform_0, window_bounds = array<i64: 1, 18, 18, 16>}, {pipeline_mode = #tpu.pipeline_mode<synchronous>, transform_indices = @transform_1, window_bounds = array<i64: 144, 96>}, {pipeline_mode = #tpu.pipeline_mode<synchronous>, transform_indices = @transform_2, window_bounds = array<i64: 96, 128>}, {pipeline_mode = #tpu.pipeline_mode<synchronous>, transform_indices = @transform_3, window_bounds = array<i64: 1, 128>}, {transform_indices = @transform_4, window_bounds = array<i64: 1, 23, 256>}]} {
    %c0 = arith.constant 0 : index
    %c0_0 = arith.constant 0 : index
    %c0_1 = arith.constant 0 : index
    %c0_2 = arith.constant 0 : index
    %0 = vector.load %arg1[%c0, %c0_0, %c0_1, %c0_2] : memref<1x18x18x16xf32, #tpu.memory_space<vmem>>, vector<1x16x16x16xf32>
    %1 = vector.shape_cast %0 : vector<1x16x16x16xf32> to vector<16x16x16xf32>
    %2 = vector.shape_cast %1 : vector<16x16x16xf32> to vector<256x16xf32>
    %c0_3 = arith.constant 0 : index
    %c0_4 = arith.constant 0 : index
    %c1 = arith.constant 1 : index
    %c0_5 = arith.constant 0 : index
    %3 = vector.load %arg1[%c0_3, %c0_4, %c1, %c0_5] : memref<1x18x18x16xf32, #tpu.memory_space<vmem>>, vector<1x16x16x16xf32>
    %4 = vector.shape_cast %3 : vector<1x16x16x16xf32> to vector<16x16x16xf32>
    %5 = vector.shape_cast %4 : vector<16x16x16xf32> to vector<256x16xf32>
    %c0_6 = arith.constant 0 : index
    %c0_7 = arith.constant 0 : index
    %c2 = arith.constant 2 : index
    %c0_8 = arith.constant 0 : index
    %6 = vector.load %arg1[%c0_6, %c0_7, %c2, %c0_8] : memref<1x18x18x16xf32, #tpu.memory_space<vmem>>, vector<1x16x16x16xf32>
    %7 = vector.shape_cast %6 : vector<1x16x16x16xf32> to vector<16x16x16xf32>
    %8 = vector.shape_cast %7 : vector<16x16x16xf32> to vector<256x16xf32>
    %c0_9 = arith.constant 0 : index
    %c1_10 = arith.constant 1 : index
    %c0_11 = arith.constant 0 : index
    %c0_12 = arith.constant 0 : index
    %9 = vector.load %arg1[%c0_9, %c1_10, %c0_11, %c0_12] : memref<1x18x18x16xf32, #tpu.memory_space<vmem>>, vector<1x16x16x16xf32>
    %10 = vector.shape_cast %9 : vector<1x16x16x16xf32> to vector<16x16x16xf32>
    %11 = vector.shape_cast %10 : vector<16x16x16xf32> to vector<256x16xf32>
    %c0_13 = arith.constant 0 : index
    %c1_14 = arith.constant 1 : index
    %c1_15 = arith.constant 1 : index
    %c0_16 = arith.constant 0 : index
    %12 = vector.load %arg1[%c0_13, %c1_14, %c1_15, %c0_16] : memref<1x18x18x16xf32, #tpu.memory_space<vmem>>, vector<1x16x16x16xf32>
    %13 = vector.shape_cast %12 : vector<1x16x16x16xf32> to vector<16x16x16xf32>
    %14 = vector.shape_cast %13 : vector<16x16x16xf32> to vector<256x16xf32>
    %c0_17 = arith.constant 0 : index
    %c1_18 = arith.constant 1 : index
    %c2_19 = arith.constant 2 : index
    %c0_20 = arith.constant 0 : index
    %15 = vector.load %arg1[%c0_17, %c1_18, %c2_19, %c0_20] : memref<1x18x18x16xf32, #tpu.memory_space<vmem>>, vector<1x16x16x16xf32>
    %16 = vector.shape_cast %15 : vector<1x16x16x16xf32> to vector<16x16x16xf32>
    %17 = vector.shape_cast %16 : vector<16x16x16xf32> to vector<256x16xf32>
    %c0_21 = arith.constant 0 : index
    %c2_22 = arith.constant 2 : index
    %c0_23 = arith.constant 0 : index
    %c0_24 = arith.constant 0 : index
    %18 = vector.load %arg1[%c0_21, %c2_22, %c0_23, %c0_24] : memref<1x18x18x16xf32, #tpu.memory_space<vmem>>, vector<1x16x16x16xf32>
    %19 = vector.shape_cast %18 : vector<1x16x16x16xf32> to vector<16x16x16xf32>
    %20 = vector.shape_cast %19 : vector<16x16x16xf32> to vector<256x16xf32>
    %c0_25 = arith.constant 0 : index
    %c2_26 = arith.constant 2 : index
    %c1_27 = arith.constant 1 : index
    %c0_28 = arith.constant 0 : index
    %21 = vector.load %arg1[%c0_25, %c2_26, %c1_27, %c0_28] : memref<1x18x18x16xf32, #tpu.memory_space<vmem>>, vector<1x16x16x16xf32>
    %22 = vector.shape_cast %21 : vector<1x16x16x16xf32> to vector<16x16x16xf32>
    %23 = vector.shape_cast %22 : vector<16x16x16xf32> to vector<256x16xf32>
    %c0_29 = arith.constant 0 : index
    %c2_30 = arith.constant 2 : index
    %c2_31 = arith.constant 2 : index
    %c0_32 = arith.constant 0 : index
    %24 = vector.load %arg1[%c0_29, %c2_30, %c2_31, %c0_32] : memref<1x18x18x16xf32, #tpu.memory_space<vmem>>, vector<1x16x16x16xf32>
    %25 = vector.shape_cast %24 : vector<1x16x16x16xf32> to vector<16x16x16xf32>
    %26 = vector.shape_cast %25 : vector<16x16x16xf32> to vector<256x16xf32>
    %27 = tpu.concatenate %2, %5, %8, %11, %14, %17, %20, %23, %26 in 1 : vector<256x16xf32>, vector<256x16xf32>, vector<256x16xf32>, vector<256x16xf32>, vector<256x16xf32>, vector<256x16xf32>, vector<256x16xf32>, vector<256x16xf32>, vector<256x16xf32> -> vector<256x144xf32>
    %28 = arith.truncf %27 : vector<256x144xf32> to vector<256x144xbf16>
    %c0_33 = arith.constant 0 : index
    %c0_34 = arith.constant 0 : index
    %29 = vector.load %arg2[%c0_33, %c0_34] : memref<144x96xbf16, #tpu.memory_space<vmem>>, vector<144x96xbf16>
    %cst = arith.constant dense<0.000000e+00> : vector<256x96xf32>
    %30 = tpu.matmul %28, %29, %cst {dimension_numbers = #tpu.dot_dimension_numbers<[1], [0], [0], [1], [0, 0, 1, 1], [], []>} : vector<256x144xbf16>, vector<144x96xbf16>, vector<256x96xf32> -> vector<256x96xf32>
    %cst_35 = arith.constant 0.000000e+00 : f32
    %31 = vector.broadcast %cst_35 : f32 to vector<256x96xf32>
    %32 = arith.maximumf %30, %31 : vector<256x96xf32>
    %33 = arith.truncf %32 : vector<256x96xf32> to vector<256x96xbf16>
    %c0_36 = arith.constant 0 : index
    %c0_37 = arith.constant 0 : index
    %34 = vector.load %arg3[%c0_36, %c0_37] : memref<96x128xbf16, #tpu.memory_space<vmem>>, vector<96x128xbf16>
    %cst_38 = arith.constant dense<0.000000e+00> : vector<256x128xf32>
    %35 = tpu.matmul %33, %34, %cst_38 {dimension_numbers = #tpu.dot_dimension_numbers<[1], [0], [0], [1], [0, 0, 1, 1], [], []>} : vector<256x96xbf16>, vector<96x128xbf16>, vector<256x128xf32> -> vector<256x128xf32>
    %c0_39 = arith.constant 0 : index
    %c0_40 = arith.constant 0 : index
    %36 = vector.load %arg4[%c0_39, %c0_40] : memref<1x128xf32, #tpu.memory_space<vmem>>, vector<1x128xf32>
    %37 = vector.broadcast %36 : vector<1x128xf32> to vector<256x128xf32>
    %38 = arith.addf %35, %37 : vector<256x128xf32>
    %39 = tpu.iota {dimensions = array<i32: 1>} : vector<256x128xi32>
    %40 = arith.negf %38 : vector<256x128xf32>
    %41 = math.exp %40 : vector<256x128xf32>
    %cst_41 = arith.constant 1.000000e+00 : f32
    %42 = vector.broadcast %cst_41 : f32 to vector<256x128xf32>
    %43 = arith.addf %42, %41 : vector<256x128xf32>
    %44 = arith.divf %42, %43 : vector<256x128xf32>
    %cst_42 = arith.constant 9.99999974E-5 : f32
    %cst_43 = arith.constant 0.999899983 : f32
    %45 = vector.broadcast %cst_42 : f32 to vector<256x128xf32>
    %46 = arith.maximumf %45, %44 : vector<256x128xf32>
    %47 = vector.broadcast %cst_43 : f32 to vector<256x128xf32>
    %48 = arith.minimumf %47, %46 : vector<256x128xf32>
    %c13_i32 = arith.constant 13 : i32
    %49 = vector.broadcast %c13_i32 : i32 to vector<256x128xi32>
    %50 = arith.cmpi slt, %39, %49 : vector<256x128xi32>
    %51 = arith.select %50, %48, %38 : vector<256x128xi1>, vector<256x128xf32>
    %52 = tpu.transpose %51, [1, 0] : vector<256x128xf32> -> vector<128x256xf32>
    %53 = vector.extract_strided_slice %52 {offsets = [0, 0], sizes = [23, 256], strides = [1, 1]} : vector<128x256xf32> to vector<23x256xf32>
    %c0_44 = arith.constant 0 : index
    %c0_45 = arith.constant 0 : index
    %c0_46 = arith.constant 0 : index
    %54 = vector.load %arg5[%c0_44, %c0_45, %c0_46] : memref<1x23x256xf32, #tpu.memory_space<vmem>>, vector<1x23x256xf32>
    %55 = vector.shape_cast %54 : vector<1x23x256xf32> to vector<23x256xf32>
    %56 = vector.shape_cast %53 : vector<23x256xf32> to vector<1x23x256xf32>
    tpu.vector_store %arg5[%c0_44, %c0_45, %c0_46], %56 {strides = array<i32>} : memref<1x23x256xf32, #tpu.memory_space<vmem>>, vector<1x23x256xf32>,
    return
  }
  func.func @transform_0(%arg0: i32) -> (i32, i32, i32, i32) {
    %c0_i32 = arith.constant 0 : i32
    %c0_i32_0 = arith.constant 0 : i32
    %c0_i32_1 = arith.constant 0 : i32
    %c0_i32_2 = arith.constant 0 : i32
    return %arg0, %c0_i32, %c0_i32_0, %c0_i32_1 : i32, i32, i32, i32
  }
  func.func @transform_1(%arg0: i32) -> (i32, i32) {
    %c0_i32 = arith.constant 0 : i32
    %c0_i32_0 = arith.constant 0 : i32
    %c0_i32_1 = arith.constant 0 : i32
    return %c0_i32, %c0_i32_0 : i32, i32
  }
  func.func @transform_2(%arg0: i32) -> (i32, i32) {
    %c0_i32 = arith.constant 0 : i32
    %c0_i32_0 = arith.constant 0 : i32
    %c0_i32_1 = arith.constant 0 : i32
    return %c0_i32, %c0_i32_0 : i32, i32
  }
  func.func @transform_3(%arg0: i32) -> (i32, i32) {
    %c0_i32 = arith.constant 0 : i32
    %c0_i32_0 = arith.constant 0 : i32
    %c0_i32_1 = arith.constant 0 : i32
    return %c0_i32, %c0_i32_0 : i32, i32
  }
  func.func @transform_4(%arg0: i32) -> (i32, i32, i32) {
    %c0_i32 = arith.constant 0 : i32
    %c0_i32_0 = arith.constant 0 : i32
    %c0_i32_1 = arith.constant 0 : i32
    return %arg0, %c0_i32, %c0_i32_0 : i32, i32, i32
  }
}

</mosaic_0001>

<llo_original>
// kernel: _lambda_.1
$region0: #{_lambda_.1}
  #allocation0 [shape = 'u32[]', space=smem, size = 0x4, offset = 0x4, fixed_abs, tag = 'smem constant byte address 0x4 - core index']
  #allocation1 [shape = 'u32[144,128]{1,0:T(1,128)}', space=vmem, size = 0x12000, scoped, tag = 'internal scratch']
  %s0 = inlined_call_operand.vmem [shape: f32[2,18,18,16], index: 0, kind: input, shape index: {}]
  %s1 = inlined_call_operand.vmem [shape: bf16[144,96], index: 1, kind: input, shape index: {}]
  %s2 = inlined_call_operand.vmem [shape: bf16[96,128], index: 2, kind: input, shape index: {}]
  %s3 = inlined_call_operand.vmem [shape: f32[1,128], index: 3, kind: input, shape index: {}]
  %s4 = inlined_call_operand.vmem [shape: f32[2,23,256], index: 4, kind: output, shape index: {}]
  %s5 = sld [smem:[#allocation0]]
  $region49: #{_lambda_.1} parent=0
    _
  %s7 = ssub.s32 1, %s5
  %s8 = scalar_select 0, %s7, %s5
  loop: start=0, step=1, limit=4
  $region2: #{_lambda_.1} parent=0 // loop_pre_header
    _
  $region3: #{_lambda_.1} parent=0 // loop_header
    %s10 = sphi 0, %s14
    %p11 = scmp.ge.s32.totalorder %s10, 4
    %s20 = sphi 0, %s22
    %s23 = sphi 0, %s20
    %s24 = sphi 0, %s23
    %s40 = sphi 0, %s24
    %s44 = sphi 0, %s44
    %s46 = sphi 0, %s44
    %s47 = sphi 0, %s46
    %s61 = sphi 0, %s47
    %s65 = sphi 0, %s65
    %s67 = sphi 0, %s65
    %s68 = sphi 0, %s67
    %s82 = sphi 0, %s68
    %s86 = sphi 0, %s86
    %s88 = sphi 0, %s86
    %s89 = sphi 0, %s88
    %s103 = sphi 0, %s89
    %s109 = sphi 0, %s111
    %s112 = sphi 0, %s109
    %s113 = sphi 0, %s112
    %s129 = sphi 0, %s113
  $region4: #{_lambda_.1} parent=0 // loop_header_branch
    %13 = sbr.rel (%p11) target = $region8
  $region5: #{_lambda_.1} parent=0 // loop_body
    %s15 = ssub.s32 %s10, 1
    %s16 = ssub.s32 %s10, 2
    %s17 = sadd.s32 %s10, 1
    %s18 = ssub.s32 %s10, %s17
    %p19 = scmp.eq.s32.totalorder %s18, 0
    %s21 = sadd.s32 %s20, 1
    %s22 = scalar_select %p19, %s20, %s21
    %p25 = pneg %p19
    %p26 = scmp.eq.s32.totalorder %s10, 1
    %p27 = por %p25, %p26
    %p28 = scmp.ne.s32.totalorder %s20, %s23
    %p29 = scmp.eq.s32.totalorder %s10, 0
    %p30 = por %p28, %p29
    %p31 = scmp.ne.s32.totalorder %s20, %s23
    %p32 = scmp.eq.s32.totalorder %s15, 1
    %p33 = por %p31, %p32
    %p34 = scmp.ne.s32.totalorder %s23, %s24
    %p35 = scmp.eq.s32.totalorder %s15, 0
    %p36 = por %p34, %p35
    %p37 = scmp.ne.s32.totalorder %s23, %s24
    %p38 = scmp.eq.s32.totalorder %s16, 1
    %p39 = por %p37, %p38
    %p41 = scmp.ne.s32.totalorder %s24, %s40
    %p42 = scmp.eq.s32.totalorder %s16, 0
    %p43 = por %p41, %p42
    %s45 = sadd.s32 %s44, 1
    %p48 = scmp.eq.s32.totalorder %s10, 1
    %p49 = scmp.ne.s32.totalorder %s44, %s46
    %p50 = scmp.eq.s32.totalorder %s10, 0
    %p51 = por %p49, %p50
    %p52 = scmp.ne.s32.totalorder %s44, %s46
    %p53 = scmp.eq.s32.totalorder %s15, 1
    %p54 = por %p52, %p53
    %p55 = scmp.ne.s32.totalorder %s46, %s47
    %p56 = scmp.eq.s32.totalorder %s15, 0
    %p57 = por %p55, %p56
    %p58 = scmp.ne.s32.totalorder %s46, %s47
    %p59 = scmp.eq.s32.totalorder %s16, 1
    %p60 = por %p58, %p59
    %p62 = scmp.ne.s32.totalorder %s47, %s61
    %p63 = scmp.eq.s32.totalorder %s16, 0
    %p64 = por %p62, %p63
    %s66 = sadd.s32 %s65, 1
    %p69 = scmp.eq.s32.totalorder %s10, 1
    %p70 = scmp.ne.s32.totalorder %s65, %s67
    %p71 = scmp.eq.s32.totalorder %s10, 0
    %p72 = por %p70, %p71
    %p73 = scmp.ne.s32.totalorder %s65, %s67
    %p74 = scmp.eq.s32.totalorder %s15, 1
    %p75 = por %p73, %p74
    %p76 = scmp.ne.s32.totalorder %s67, %s68
    %p77 = scmp.eq.s32.totalorder %s15, 0
    %p78 = por %p76, %p77
    %p79 = scmp.ne.s32.totalorder %s67, %s68
    %p80 = scmp.eq.s32.totalorder %s16, 1
    %p81 = por %p79, %p80
    %p83 = scmp.ne.s32.totalorder %s68, %s82
    %p84 = scmp.eq.s32.totalorder %s16, 0
    %p85 = por %p83, %p84
    %s87 = sadd.s32 %s86, 1
    %p90 = scmp.eq.s32.totalorder %s10, 1
    %p91 = scmp.ne.s32.totalorder %s86, %s88
    %p92 = scmp.eq.s32.totalorder %s10, 0
    %p93 = por %p91, %p92
    %p94 = scmp.ne.s32.totalorder %s86, %s88
    %p95 = scmp.eq.s32.totalorder %s15, 1
    %p96 = por %p94, %p95
    %p97 = scmp.ne.s32.totalorder %s88, %s89
    %p98 = scmp.eq.s32.totalorder %s15, 0
    %p99 = por %p97, %p98
    %p100 = scmp.ne.s32.totalorder %s88, %s89
    %p101 = scmp.eq.s32.totalorder %s16, 1
    %p102 = por %p100, %p101
    %p104 = scmp.ne.s32.totalorder %s89, %s103
    %p105 = scmp.eq.s32.totalorder %s16, 0
    %p106 = por %p104, %p105
    %s107 = ssub.s32 %s10, %s17
    %p108 = scmp.eq.s32.totalorder %s107, 0
    %s110 = sadd.s32 %s109, 1
    %s111 = scalar_select %p108, %s109, %s110
    %p114 = pneg %p108
    %p115 = scmp.eq.s32.totalorder %s10, 1
    %p116 = por %p114, %p115
    %p117 = scmp.ne.s32.totalorder %s109, %s112
    %p118 = scmp.eq.s32.totalorder %s10, 0
    %p119 = por %p117, %p118
    %p120 = scmp.ne.s32.totalorder %s109, %s112
    %p121 = scmp.eq.s32.totalorder %s15, 1
    %p122 = por %p120, %p121
    %p123 = scmp.ne.s32.totalorder %s112, %s113
    %p124 = scmp.eq.s32.totalorder %s15, 0
    %p125 = por %p123, %p124
    %p126 = scmp.ne.s32.totalorder %s112, %s113
    %p127 = scmp.eq.s32.totalorder %s16, 1
    %p128 = por %p126, %p127
    %p130 = scmp.ne.s32.totalorder %s113, %s129
    %p131 = scmp.eq.s32.totalorder %s16, 0
    %p132 = por %p130, %p131
    %p133 = scmp.le.s32.totalorder 1, %s10
    %p134 = scmp.lt.s32.totalorder %s10, 3
    %p135 = pnand %p133, %p134
    %p136 = pneg %p135
    // Predicated region
    $region9: #{_lambda_.1} parent=5 // pred_check
      _
    $region10: #{_lambda_.1} parent=5 // pred_check_branch
      %138 = sbr.rel (%p135) target = $region12
    $region11: #{_lambda_.1} parent=5 // pred_region
      %s139 = ssub.s32 %s10, 1
      // Predicated region
      $region13: #{_lambda_.1} parent=11 // pred_check
        %p140 = pneg %p57
      $region14: #{_lambda_.1} parent=11 // pred_check_branch
        %142 = sbr.rel (%p140) target = $region16
      $region15: #{_lambda_.1} parent=11 // pred_region
        _
      $region16: #{_lambda_.1} parent=11 // pred_fallthru
        _
      // Predicated region
      $region17: #{_lambda_.1} parent=11 // pred_check
        %p143 = pneg %p78
      $region18: #{_lambda_.1} parent=11 // pred_check_branch
        %145 = sbr.rel (%p143) target = $region20
      $region19: #{_lambda_.1} parent=11 // pred_region
        _
      $region20: #{_lambda_.1} parent=11 // pred_fallthru
        _
      // Predicated region
      $region21: #{_lambda_.1} parent=11 // pred_check
        %p146 = pneg %p99
      $region22: #{_lambda_.1} parent=11 // pred_check_branch
        %148 = sbr.rel (%p146) target = $region24
      $region23: #{_lambda_.1} parent=11 // pred_region
        _
      $region24: #{_lambda_.1} parent=11 // pred_fallthru
        _
    $region12: #{_lambda_.1} parent=5 // pred_fallthru
      _
    %p149 = scmp.lt.s32.totalorder %s10, 2
    // Predicated region
    $region25: #{_lambda_.1} parent=5 // pred_check
      %p150 = pneg %p149
    $region26: #{_lambda_.1} parent=5 // pred_check_branch
      %152 = sbr.rel (%p150) target = $region28
    $region27: #{_lambda_.1} parent=5 // pred_region
      // Predicated region
      $region29: #{_lambda_.1} parent=27 // pred_check
        %p153 = pneg %p30
      $region30: #{_lambda_.1} parent=27 // pred_check_branch
        %155 = sbr.rel (%p153) target = $region32
      $region31: #{_lambda_.1} parent=27 // pred_region
        %p156 = scmp.lt.s32.totalorder %s10, 1
        %s157 = scalar_select %p156, %s10, 1
        %s158 = smul.addr %s157, 54
        %s159 = smul.addr %s158, 8
        %s160 = scalar_lea.vmem %s0, %s159
      $region32: #{_lambda_.1} parent=27 // pred_fallthru
        _
    $region28: #{_lambda_.1} parent=5 // pred_fallthru
      _
    %p161 = scmp.le.s32.totalorder 1, %s10
    %p162 = scmp.lt.s32.totalorder %s10, 3
    %p163 = pnand %p161, %p162
    %p164 = pneg %p163
    // Predicated region
    $region33: #{_lambda_.1} parent=5 // pred_check
      _
    $region34: #{_lambda_.1} parent=5 // pred_check_branch
      %166 = sbr.rel (%p163) target = $region36
    $region35: #{_lambda_.1} parent=5 // pred_region
      %s167 = ssub.s32 %s10, 1
      %p168 = scmp.lt.s32.totalorder %s15, 1
      %s169 = scalar_select %p168, %s15, 1
      %s170 = smul.addr %s169, 54
      %s171 = smul.addr %s170, 8
      %s172 = scalar_lea.vmem %s0, %s171
      %p173 = pneg %p36
      %p174 = pneg %p33
      %p175 = pneg %p57
      %p176 = pneg %p54
      %p177 = pneg %p78
      %p178 = pneg %p75
      %p179 = pneg %p99
      %p180 = pneg %p96
      %p181 = pneg %p125
      %p182 = pneg %p122
      %p183 = scmp.lt.s32.totalorder %s15, 1
      %s184 = scalar_select %p183, %s15, 1
      %s185 = smul.addr %s184, 6
      %s186 = smul.addr %s185, 8
      %s187 = scalar_lea.vmem %s4, %s186
      %p188 = scmp.lt.s32.totalorder %s15, 1
      %s189 = scalar_select %p188, %s15, 1
      %s190 = smul.addr %s189, 54
      %s191 = smul.addr %s190, 8
      %s192 = scalar_lea.vmem %s0, %s191
      %p193 = scmp.lt.s32.totalorder %s15, 1
      %s194 = scalar_select %p193, %s15, 1
      %s195 = smul.addr %s194, 6
      %s196 = smul.addr %s195, 8
      %s197 = scalar_lea.vmem %s4, %s196
      %v199 = vld [vmem:[%s192] sm:$0xff]
      %v200 = vld [vmem:[%s192 + $0x8] sm:$0xff]
      %v201 = vld [vmem:[%s192 + $0x18] sm:$0xff]
      %v202 = vld [vmem:[%s192 + $0x20] sm:$0xff]
      %v203 = vld [vmem:[%s192 + $0x30] sm:$0xff]
      %v204 = vld [vmem:[%s192 + $0x38] sm:$0xff]
      %v205 = vld [vmem:[%s192 + $0x48] sm:$0xff]
      %v206 = vld [vmem:[%s192 + $0x50] sm:$0xff]
      %v207 = vld [vmem:[%s192 + $0x60] sm:$0xff]
      %v208 = vld [vmem:[%s192 + $0x68] sm:$0xff]
      %v209 = vld [vmem:[%s192 + $0x78] sm:$0xff]
      %v210 = vld [vmem:[%s192 + $0x80] sm:$0xff]
      %v211 = vld [vmem:[%s192 + $0x90] sm:$0xff]
      %v212 = vld [vmem:[%s192 + $0x98] sm:$0xff]
      %v213 = vld [vmem:[%s192 + $0xa8] sm:$0xff]
      %v214 = vld [vmem:[%s192 + $0xb0] sm:$0xff]
      %v215 = vld [vmem:[%s192 + $0xc0] sm:$0xff]
      %v216 = vld [vmem:[%s192 + $0xc8] sm:$0xff]
      %v217 = vld [vmem:[%s192 + $0xd8] sm:$0xff]
      %v218 = vld [vmem:[%s192 + $0xe0] sm:$0xff]
      %v219 = vld [vmem:[%s192 + $0xf0] sm:$0xff]
      %v220 = vld [vmem:[%s192 + $0xf8] sm:$0xff]
      %v221 = vld [vmem:[%s192 + $0x108] sm:$0xff]
      %v222 = vld [vmem:[%s192 + $0x110] sm:$0xff]
      %v223 = vld [vmem:[%s192 + $0x120] sm:$0xff]
      %v224 = vld [vmem:[%s192 + $0x128] sm:$0xff]
      %v225 = vld [vmem:[%s192 + $0x138] sm:$0xff]
      %v226 = vld [vmem:[%s192 + $0x140] sm:$0xff]
      %v227 = vld [vmem:[%s192 + $0x150] sm:$0xff]
      %v228 = vld [vmem:[%s192 + $0x158] sm:$0xff]
      %v229 = vld [vmem:[%s192 + $0x168] sm:$0xff]
      %v230 = vld [vmem:[%s192 + $0x170] sm:$0xff]
      %v231 = vld [vmem:[%s192 + $0x1] sm:$0xff]
      %v232 = vld [vmem:[%s192 + $0x9] sm:$0xff]
      %v233 = vld [vmem:[%s192 + $0x19] sm:$0xff]
      %v234 = vld [vmem:[%s192 + $0x21] sm:$0xff]
      %v235 = vld [vmem:[%s192 + $0x31] sm:$0xff]
      %v236 = vld [vmem:[%s192 + $0x39] sm:$0xff]
      %v237 = vld [vmem:[%s192 + $0x49] sm:$0xff]
      %v238 = vld [vmem:[%s192 + $0x51] sm:$0xff]
      %v239 = vld [vmem:[%s192 + $0x61] sm:$0xff]
      %v240 = vld [vmem:[%s192 + $0x69] sm:$0xff]
      %v241 = vld [vmem:[%s192 + $0x79] sm:$0xff]
      %v242 = vld [vmem:[%s192 + $0x81] sm:$0xff]
      %v243 = vld [vmem:[%s192 + $0x91] sm:$0xff]
      %v244 = vld [vmem:[%s192 + $0x99] sm:$0xff]
      %v245 = vld [vmem:[%s192 + $0xa9] sm:$0xff]
      %v246 = vld [vmem:[%s192 + $0xb1] sm:$0xff]
      %v247 = vld [vmem:[%s192 + $0xc1] sm:$0xff]
      %v248 = vld [vmem:[%s192 + $0xc9] sm:$0xff]
      %v249 = vld [vmem:[%s192 + $0xd9] sm:$0xff]
      %v250 = vld [vmem:[%s192 + $0xe1] sm:$0xff]
      %v251 = vld [vmem:[%s192 + $0xf1] sm:$0xff]
      %v252 = vld [vmem:[%s192 + $0xf9] sm:$0xff]
      %v253 = vld [vmem:[%s192 + $0x109] sm:$0xff]
      %v254 = vld [vmem:[%s192 + $0x111] sm:$0xff]
      %v255 = vld [vmem:[%s192 + $0x121] sm:$0xff]
      %v256 = vld [vmem:[%s192 + $0x129] sm:$0xff]
      %v257 = vld [vmem:[%s192 + $0x139] sm:$0xff]
      %v258 = vld [vmem:[%s192 + $0x141] sm:$0xff]
      %v259 = vld [vmem:[%s192 + $0x151] sm:$0xff]
      %v260 = vld [vmem:[%s192 + $0x159] sm:$0xff]
      %v261 = vld [vmem:[%s192 + $0x169] sm:$0xff]
      %v262 = vld [vmem:[%s192 + $0x171] sm:$0xff]
      %v263 = vld [vmem:[%s192 + $0x2] sm:$0xff]
      %v264 = vld [vmem:[%s192 + $0xa] sm:$0xff]
      %v265 = vld [vmem:[%s192 + $0x1a] sm:$0xff]
      %v266 = vld [vmem:[%s192 + $0x22] sm:$0xff]
      %v267 = vld [vmem:[%s192 + $0x32] sm:$0xff]
      %v268 = vld [vmem:[%s192 + $0x3a] sm:$0xff]
      %v269 = vld [vmem:[%s192 + $0x4a] sm:$0xff]
      %v270 = vld [vmem:[%s192 + $0x52] sm:$0xff]
      %v271 = vld [vmem:[%s192 + $0x62] sm:$0xff]
      %v272 = vld [vmem:[%s192 + $0x6a] sm:$0xff]
      %v273 = vld [vmem:[%s192 + $0x7a] sm:$0xff]
      %v274 = vld [vmem:[%s192 + $0x82] sm:$0xff]
      %v275 = vld [vmem:[%s192 + $0x92] sm:$0xff]
      %v276 = vld [vmem:[%s192 + $0x9a] sm:$0xff]
      %v277 = vld [vmem:[%s192 + $0xaa] sm:$0xff]
      %v278 = vld [vmem:[%s192 + $0xb2] sm:$0xff]
      %v279 = vld [vmem:[%s192 + $0xc2] sm:$0xff]
      %v280 = vld [vmem:[%s192 + $0xca] sm:$0xff]
      %v281 = vld [vmem:[%s192 + $0xda] sm:$0xff]
      %v282 = vld [vmem:[%s192 + $0xe2] sm:$0xff]
      %v283 = vld [vmem:[%s192 + $0xf2] sm:$0xff]
      %v284 = vld [vmem:[%s192 + $0xfa] sm:$0xff]
      %v285 = vld [vmem:[%s192 + $0x10a] sm:$0xff]
      %v286 = vld [vmem:[%s192 + $0x112] sm:$0xff]
      %v287 = vld [vmem:[%s192 + $0x122] sm:$0xff]
      %v288 = vld [vmem:[%s192 + $0x12a] sm:$0xff]
      %v289 = vld [vmem:[%s192 + $0x13a] sm:$0xff]
      %v290 = vld [vmem:[%s192 + $0x142] sm:$0xff]
      %v291 = vld [vmem:[%s192 + $0x152] sm:$0xff]
      %v292 = vld [vmem:[%s192 + $0x15a] sm:$0xff]
      %v293 = vld [vmem:[%s192 + $0x16a] sm:$0xff]
      %v294 = vld [vmem:[%s192 + $0x172] sm:$0xff]
      %s295 = scalar_lea.vmem %s192, 24
      %v296 = vld [vmem:[%s295] sm:$0xff]
      %v297 = vld [vmem:[%s295 + $0x8] sm:$0xff]
      %v298 = vld [vmem:[%s295 + $0x18] sm:$0xff]
      %v299 = vld [vmem:[%s295 + $0x20] sm:$0xff]
      %v300 = vld [vmem:[%s295 + $0x30] sm:$0xff]
      %v301 = vld [vmem:[%s295 + $0x38] sm:$0xff]
      %v302 = vld [vmem:[%s295 + $0x48] sm:$0xff]
      %v303 = vld [vmem:[%s295 + $0x50] sm:$0xff]
      %v304 = vld [vmem:[%s295 + $0x60] sm:$0xff]
      %v305 = vld [vmem:[%s295 + $0x68] sm:$0xff]
      %v306 = vld [vmem:[%s295 + $0x78] sm:$0xff]
      %v307 = vld [vmem:[%s295 + $0x80] sm:$0xff]
      %v308 = vld [vmem:[%s295 + $0x90] sm:$0xff]
      %v309 = vld [vmem:[%s295 + $0x98] sm:$0xff]
      %v310 = vld [vmem:[%s295 + $0xa8] sm:$0xff]
      %v311 = vld [vmem:[%s295 + $0xb0] sm:$0xff]
      %v312 = vld [vmem:[%s295 + $0xc0] sm:$0xff]
      %v313 = vld [vmem:[%s295 + $0xc8] sm:$0xff]
      %v314 = vld [vmem:[%s295 + $0xd8] sm:$0xff]
      %v315 = vld [vmem:[%s295 + $0xe0] sm:$0xff]
      %v316 = vld [vmem:[%s295 + $0xf0] sm:$0xff]
      %v317 = vld [vmem:[%s295 + $0xf8] sm:$0xff]
      %v318 = vld [vmem:[%s295 + $0x108] sm:$0xff]
      %v319 = vld [vmem:[%s295 + $0x110] sm:$0xff]
      %v320 = vld [vmem:[%s295 + $0x120] sm:$0xff]
      %v321 = vld [vmem:[%s295 + $0x128] sm:$0xff]
      %v322 = vld [vmem:[%s295 + $0x138] sm:$0xff]
      %v323 = vld [vmem:[%s295 + $0x140] sm:$0xff]
      %v324 = vld [vmem:[%s295 + $0x150] sm:$0xff]
      %v325 = vld [vmem:[%s295 + $0x158] sm:$0xff]
      %v326 = vld [vmem:[%s295 + $0x168] sm:$0xff]
      %v327 = vld [vmem:[%s295 + $0x170] sm:$0xff]
      %v328 = vld [vmem:[%s295 + $0x1] sm:$0xff]
      %v329 = vld [vmem:[%s295 + $0x9] sm:$0xff]
      %v330 = vld [vmem:[%s295 + $0x19] sm:$0xff]
      %v331 = vld [vmem:[%s295 + $0x21] sm:$0xff]
      %v332 = vld [vmem:[%s295 + $0x31] sm:$0xff]
      %v333 = vld [vmem:[%s295 + $0x39] sm:$0xff]
      %v334 = vld [vmem:[%s295 + $0x49] sm:$0xff]
      %v335 = vld [vmem:[%s295 + $0x51] sm:$0xff]
      %v336 = vld [vmem:[%s295 + $0x61] sm:$0xff]
      %v337 = vld [vmem:[%s295 + $0x69] sm:$0xff]
      %v338 = vld [vmem:[%s295 + $0x79] sm:$0xff]
      %v339 = vld [vmem:[%s295 + $0x81] sm:$0xff]
      %v340 = vld [vmem:[%s295 + $0x91] sm:$0xff]
      %v341 = vld [vmem:[%s295 + $0x99] sm:$0xff]
      %v342 = vld [vmem:[%s295 + $0xa9] sm:$0xff]
      %v343 = vld [vmem:[%s295 + $0xb1] sm:$0xff]
      %v344 = vld [vmem:[%s295 + $0xc1] sm:$0xff]
      %v345 = vld [vmem:[%s295 + $0xc9] sm:$0xff]
      %v346 = vld [vmem:[%s295 + $0xd9] sm:$0xff]
      %v347 = vld [vmem:[%s295 + $0xe1] sm:$0xff]
      %v348 = vld [vmem:[%s295 + $0xf1] sm:$0xff]
      %v349 = vld [vmem:[%s295 + $0xf9] sm:$0xff]
      %v350 = vld [vmem:[%s295 + $0x109] sm:$0xff]
      %v351 = vld [vmem:[%s295 + $0x111] sm:$0xff]
      %v352 = vld [vmem:[%s295 + $0x121] sm:$0xff]
      %v353 = vld [vmem:[%s295 + $0x129] sm:$0xff]
      %v354 = vld [vmem:[%s295 + $0x139] sm:$0xff]
      %v355 = vld [vmem:[%s295 + $0x141] sm:$0xff]
      %v356 = vld [vmem:[%s295 + $0x151] sm:$0xff]
      %v357 = vld [vmem:[%s295 + $0x159] sm:$0xff]
      %v358 = vld [vmem:[%s295 + $0x169] sm:$0xff]
      %v359 = vld [vmem:[%s295 + $0x171] sm:$0xff]
      %v360 = vld [vmem:[%s295 + $0x2] sm:$0xff]
      %v361 = vld [vmem:[%s295 + $0xa] sm:$0xff]
      %v362 = vld [vmem:[%s295 + $0x1a] sm:$0xff]
      %v363 = vld [vmem:[%s295 + $0x22] sm:$0xff]
      %v364 = vld [vmem:[%s295 + $0x32] sm:$0xff]
      %v365 = vld [vmem:[%s295 + $0x3a] sm:$0xff]
      %v366 = vld [vmem:[%s295 + $0x4a] sm:$0xff]
      %v367 = vld [vmem:[%s295 + $0x52] sm:$0xff]
      %v368 = vld [vmem:[%s295 + $0x62] sm:$0xff]
      %v369 = vld [vmem:[%s295 + $0x6a] sm:$0xff]
      %v370 = vld [vmem:[%s295 + $0x7a] sm:$0xff]
      %v371 = vld [vmem:[%s295 + $0x82] sm:$0xff]
      %v372 = vld [vmem:[%s295 + $0x92] sm:$0xff]
      %v373 = vld [vmem:[%s295 + $0x9a] sm:$0xff]
      %v374 = vld [vmem:[%s295 + $0xaa] sm:$0xff]
      %v375 = vld [vmem:[%s295 + $0xb2] sm:$0xff]
      %v376 = vld [vmem:[%s295 + $0xc2] sm:$0xff]
      %v377 = vld [vmem:[%s295 + $0xca] sm:$0xff]
      %v378 = vld [vmem:[%s295 + $0xda] sm:$0xff]
      %v379 = vld [vmem:[%s295 + $0xe2] sm:$0xff]
      %v380 = vld [vmem:[%s295 + $0xf2] sm:$0xff]
      %v381 = vld [vmem:[%s295 + $0xfa] sm:$0xff]
      %v382 = vld [vmem:[%s295 + $0x10a] sm:$0xff]
      %v383 = vld [vmem:[%s295 + $0x112] sm:$0xff]
      %v384 = vld [vmem:[%s295 + $0x122] sm:$0xff]
      %v385 = vld [vmem:[%s295 + $0x12a] sm:$0xff]
      %v386 = vld [vmem:[%s295 + $0x13a] sm:$0xff]
      %v387 = vld [vmem:[%s295 + $0x142] sm:$0xff]
      %v388 = vld [vmem:[%s295 + $0x152] sm:$0xff]
      %v389 = vld [vmem:[%s295 + $0x15a] sm:$0xff]
      %v390 = vld [vmem:[%s295 + $0x16a] sm:$0xff]
      %v391 = vld [vmem:[%s295 + $0x172] sm:$0xff]
      %s392 = scalar_lea.vmem %s192, 48
      %v393 = vld [vmem:[%s392] sm:$0xff]
      %v394 = vld [vmem:[%s392 + $0x8] sm:$0xff]
      %v395 = vld [vmem:[%s392 + $0x18] sm:$0xff]
      %v396 = vld [vmem:[%s392 + $0x20] sm:$0xff]
      %v397 = vld [vmem:[%s392 + $0x30] sm:$0xff]
      %v398 = vld [vmem:[%s392 + $0x38] sm:$0xff]
      %v399 = vld [vmem:[%s392 + $0x48] sm:$0xff]
      %v400 = vld [vmem:[%s392 + $0x50] sm:$0xff]
      %v401 = vld [vmem:[%s392 + $0x60] sm:$0xff]
      %v402 = vld [vmem:[%s392 + $0x68] sm:$0xff]
      %v403 = vld [vmem:[%s392 + $0x78] sm:$0xff]
      %v404 = vld [vmem:[%s392 + $0x80] sm:$0xff]
      %v405 = vld [vmem:[%s392 + $0x90] sm:$0xff]
      %v406 = vld [vmem:[%s392 + $0x98] sm:$0xff]
      %v407 = vld [vmem:[%s392 + $0xa8] sm:$0xff]
      %v408 = vld [vmem:[%s392 + $0xb0] sm:$0xff]
      %v409 = vld [vmem:[%s392 + $0xc0] sm:$0xff]
      %v410 = vld [vmem:[%s392 + $0xc8] sm:$0xff]
      %v411 = vld [vmem:[%s392 + $0xd8] sm:$0xff]
      %v412 = vld [vmem:[%s392 + $0xe0] sm:$0xff]
      %v413 = vld [vmem:[%s392 + $0xf0] sm:$0xff]
      %v414 = vld [vmem:[%s392 + $0xf8] sm:$0xff]
      %v415 = vld [vmem:[%s392 + $0x108] sm:$0xff]
      %v416 = vld [vmem:[%s392 + $0x110] sm:$0xff]
      %v417 = vld [vmem:[%s392 + $0x120] sm:$0xff]
      %v418 = vld [vmem:[%s392 + $0x128] sm:$0xff]
      %v419 = vld [vmem:[%s392 + $0x138] sm:$0xff]
      %v420 = vld [vmem:[%s392 + $0x140] sm:$0xff]
      %v421 = vld [vmem:[%s392 + $0x150] sm:$0xff]
      %v422 = vld [vmem:[%s392 + $0x158] sm:$0xff]
      %v423 = vld [vmem:[%s392 + $0x168] sm:$0xff]
      %v424 = vld [vmem:[%s392 + $0x170] sm:$0xff]
      %v425 = vld [vmem:[%s392 + $0x1] sm:$0xff]
      %v426 = vld [vmem:[%s392 + $0x9] sm:$0xff]
      %v427 = vld [vmem:[%s392 + $0x19] sm:$0xff]
      %v428 = vld [vmem:[%s392 + $0x21] sm:$0xff]
      %v429 = vld [vmem:[%s392 + $0x31] sm:$0xff]
      %v430 = vld [vmem:[%s392 + $0x39] sm:$0xff]
      %v431 = vld [vmem:[%s392 + $0x49] sm:$0xff]
      %v432 = vld [vmem:[%s392 + $0x51] sm:$0xff]
      %v433 = vld [vmem:[%s392 + $0x61] sm:$0xff]
      %v434 = vld [vmem:[%s392 + $0x69] sm:$0xff]
      %v435 = vld [vmem:[%s392 + $0x79] sm:$0xff]
      %v436 = vld [vmem:[%s392 + $0x81] sm:$0xff]
      %v437 = vld [vmem:[%s392 + $0x91] sm:$0xff]
      %v438 = vld [vmem:[%s392 + $0x99] sm:$0xff]
      %v439 = vld [vmem:[%s392 + $0xa9] sm:$0xff]
      %v440 = vld [vmem:[%s392 + $0xb1] sm:$0xff]
      %v441 = vld [vmem:[%s392 + $0xc1] sm:$0xff]
      %v442 = vld [vmem:[%s392 + $0xc9] sm:$0xff]
      %v443 = vld [vmem:[%s392 + $0xd9] sm:$0xff]
      %v444 = vld [vmem:[%s392 + $0xe1] sm:$0xff]
      %v445 = vld [vmem:[%s392 + $0xf1] sm:$0xff]
      %v446 = vld [vmem:[%s392 + $0xf9] sm:$0xff]
      %v447 = vld [vmem:[%s392 + $0x109] sm:$0xff]
      %v448 = vld [vmem:[%s392 + $0x111] sm:$0xff]
      %v449 = vld [vmem:[%s392 + $0x121] sm:$0xff]
      %v450 = vld [vmem:[%s392 + $0x129] sm:$0xff]
      %v451 = vld [vmem:[%s392 + $0x139] sm:$0xff]
      %v452 = vld [vmem:[%s392 + $0x141] sm:$0xff]
      %v453 = vld [vmem:[%s392 + $0x151] sm:$0xff]
      %v454 = vld [vmem:[%s392 + $0x159] sm:$0xff]
      %v455 = vld [vmem:[%s392 + $0x169] sm:$0xff]
      %v456 = vld [vmem:[%s392 + $0x171] sm:$0xff]
      %v457 = vld [vmem:[%s392 + $0x2] sm:$0xff]
      %v458 = vld [vmem:[%s392 + $0xa] sm:$0xff]
      %v459 = vld [vmem:[%s392 + $0x1a] sm:$0xff]
      %v460 = vld [vmem:[%s392 + $0x22] sm:$0xff]
      %v461 = vld [vmem:[%s392 + $0x32] sm:$0xff]
      %v462 = vld [vmem:[%s392 + $0x3a] sm:$0xff]
      %v463 = vld [vmem:[%s392 + $0x4a] sm:$0xff]
      %v464 = vld [vmem:[%s392 + $0x52] sm:$0xff]
      %v465 = vld [vmem:[%s392 + $0x62] sm:$0xff]
      %v466 = vld [vmem:[%s392 + $0x6a] sm:$0xff]
      %v467 = vld [vmem:[%s392 + $0x7a] sm:$0xff]
      %v468 = vld [vmem:[%s392 + $0x82] sm:$0xff]
      %v469 = vld [vmem:[%s392 + $0x92] sm:$0xff]
      %v470 = vld [vmem:[%s392 + $0x9a] sm:$0xff]
      %v471 = vld [vmem:[%s392 + $0xaa] sm:$0xff]
      %v472 = vld [vmem:[%s392 + $0xb2] sm:$0xff]
      %v473 = vld [vmem:[%s392 + $0xc2] sm:$0xff]
      %v474 = vld [vmem:[%s392 + $0xca] sm:$0xff]
      %v475 = vld [vmem:[%s392 + $0xda] sm:$0xff]
      %v476 = vld [vmem:[%s392 + $0xe2] sm:$0xff]
      %v477 = vld [vmem:[%s392 + $0xf2] sm:$0xff]
      %v478 = vld [vmem:[%s392 + $0xfa] sm:$0xff]
      %v479 = vld [vmem:[%s392 + $0x10a] sm:$0xff]
      %v480 = vld [vmem:[%s392 + $0x112] sm:$0xff]
      %v481 = vld [vmem:[%s392 + $0x122] sm:$0xff]
      %v482 = vld [vmem:[%s392 + $0x12a] sm:$0xff]
      %v483 = vld [vmem:[%s392 + $0x13a] sm:$0xff]
      %v484 = vld [vmem:[%s392 + $0x142] sm:$0xff]
      %v485 = vld [vmem:[%s392 + $0x152] sm:$0xff]
      %v486 = vld [vmem:[%s392 + $0x15a] sm:$0xff]
      %v487 = vld [vmem:[%s392 + $0x16a] sm:$0xff]
      %v488 = vld [vmem:[%s392 + $0x172] sm:$0xff]
      %521 = vrot.lane.b32.xlu0 %v231, 16
      %v522 = vpop.permute.xlu0 %521
      %523 = vrot.lane.b32.xlu0 %v232, 16
      %v524 = vpop.permute.xlu0 %523
      %525 = vrot.lane.b32.xlu0 %v233, 16
      %v526 = vpop.permute.xlu0 %525
      %527 = vrot.lane.b32.xlu0 %v234, 16
      %v528 = vpop.permute.xlu0 %527
      %529 = vrot.lane.b32.xlu0 %v235, 16
      %v530 = vpop.permute.xlu0 %529
      %531 = vrot.lane.b32.xlu0 %v236, 16
      %v532 = vpop.permute.xlu0 %531
      %533 = vrot.lane.b32.xlu0 %v237, 16
      %v534 = vpop.permute.xlu0 %533
      %535 = vrot.lane.b32.xlu0 %v238, 16
      %v536 = vpop.permute.xlu0 %535
      %537 = vrot.lane.b32.xlu0 %v239, 16
      %v538 = vpop.permute.xlu0 %537
      %539 = vrot.lane.b32.xlu0 %v240, 16
      %v540 = vpop.permute.xlu0 %539
      %541 = vrot.lane.b32.xlu0 %v241, 16
      %v542 = vpop.permute.xlu0 %541
      %543 = vrot.lane.b32.xlu0 %v242, 16
      %v544 = vpop.permute.xlu0 %543
      %545 = vrot.lane.b32.xlu0 %v243, 16
      %v546 = vpop.permute.xlu0 %545
      %547 = vrot.lane.b32.xlu0 %v244, 16
      %v548 = vpop.permute.xlu0 %547
      %549 = vrot.lane.b32.xlu0 %v245, 16
      %v550 = vpop.permute.xlu0 %549
      %551 = vrot.lane.b32.xlu0 %v246, 16
      %v552 = vpop.permute.xlu0 %551
      %553 = vrot.lane.b32.xlu0 %v247, 16
      %v554 = vpop.permute.xlu0 %553
      %555 = vrot.lane.b32.xlu0 %v248, 16
      %v556 = vpop.permute.xlu0 %555
      %557 = vrot.lane.b32.xlu0 %v249, 16
      %v558 = vpop.permute.xlu0 %557
      %559 = vrot.lane.b32.xlu0 %v250, 16
      %v560 = vpop.permute.xlu0 %559
      %561 = vrot.lane.b32.xlu0 %v251, 16
      %v562 = vpop.permute.xlu0 %561
      %563 = vrot.lane.b32.xlu0 %v252, 16
      %v564 = vpop.permute.xlu0 %563
      %565 = vrot.lane.b32.xlu0 %v253, 16
      %v566 = vpop.permute.xlu0 %565
      %567 = vrot.lane.b32.xlu0 %v254, 16
      %v568 = vpop.permute.xlu0 %567
      %569 = vrot.lane.b32.xlu0 %v255, 16
      %v570 = vpop.permute.xlu0 %569
      %571 = vrot.lane.b32.xlu0 %v256, 16
      %v572 = vpop.permute.xlu0 %571
      %573 = vrot.lane.b32.xlu0 %v257, 16
      %v574 = vpop.permute.xlu0 %573
      %575 = vrot.lane.b32.xlu0 %v258, 16
      %v576 = vpop.permute.xlu0 %575
      %577 = vrot.lane.b32.xlu0 %v259, 16
      %v578 = vpop.permute.xlu0 %577
      %579 = vrot.lane.b32.xlu0 %v260, 16
      %v580 = vpop.permute.xlu0 %579
      %581 = vrot.lane.b32.xlu0 %v261, 16
      %v582 = vpop.permute.xlu0 %581
      %583 = vrot.lane.b32.xlu0 %v262, 16
      %v584 = vpop.permute.xlu0 %583
      %649 = vrot.lane.b32.xlu0 %v263, 32
      %v650 = vpop.permute.xlu0 %649
      %651 = vrot.lane.b32.xlu0 %v264, 32
      %v652 = vpop.permute.xlu0 %651
      %653 = vrot.lane.b32.xlu0 %v265, 32
      %v654 = vpop.permute.xlu0 %653
      %655 = vrot.lane.b32.xlu0 %v266, 32
      %v656 = vpop.permute.xlu0 %655
      %657 = vrot.lane.b32.xlu0 %v267, 32
      %v658 = vpop.permute.xlu0 %657
      %659 = vrot.lane.b32.xlu0 %v268, 32
      %v660 = vpop.permute.xlu0 %659
      %661 = vrot.lane.b32.xlu0 %v269, 32
      %v662 = vpop.permute.xlu0 %661
      %663 = vrot.lane.b32.xlu0 %v270, 32
      %v664 = vpop.permute.xlu0 %663
      %665 = vrot.lane.b32.xlu0 %v271, 32
      %v666 = vpop.permute.xlu0 %665
      %667 = vrot.lane.b32.xlu0 %v272, 32
      %v668 = vpop.permute.xlu0 %667
      %669 = vrot.lane.b32.xlu0 %v273, 32
      %v670 = vpop.permute.xlu0 %669
      %671 = vrot.lane.b32.xlu0 %v274, 32
      %v672 = vpop.permute.xlu0 %671
      %673 = vrot.lane.b32.xlu0 %v275, 32
      %v674 = vpop.permute.xlu0 %673
      %675 = vrot.lane.b32.xlu0 %v276, 32
      %v676 = vpop.permute.xlu0 %675
      %677 = vrot.lane.b32.xlu0 %v277, 32
      %v678 = vpop.permute.xlu0 %677
      %679 = vrot.lane.b32.xlu0 %v278, 32
      %v680 = vpop.permute.xlu0 %679
      %681 = vrot.lane.b32.xlu0 %v279, 32
      %v682 = vpop.permute.xlu0 %681
      %683 = vrot.lane.b32.xlu0 %v280, 32
      %v684 = vpop.permute.xlu0 %683
      %685 = vrot.lane.b32.xlu0 %v281, 32
      %v686 = vpop.permute.xlu0 %685
      %687 = vrot.lane.b32.xlu0 %v282, 32
      %v688 = vpop.permute.xlu0 %687
      %689 = vrot.lane.b32.xlu0 %v283, 32
      %v690 = vpop.permute.xlu0 %689
      %691 = vrot.lane.b32.xlu0 %v284, 32
      %v692 = vpop.permute.xlu0 %691
      %693 = vrot.lane.b32.xlu0 %v285, 32
      %v694 = vpop.permute.xlu0 %693
      %695 = vrot.lane.b32.xlu0 %v286, 32
      %v696 = vpop.permute.xlu0 %695
      %697 = vrot.lane.b32.xlu0 %v287, 32
      %v698 = vpop.permute.xlu0 %697
      %699 = vrot.lane.b32.xlu0 %v288, 32
      %v700 = vpop.permute.xlu0 %699
      %701 = vrot.lane.b32.xlu0 %v289, 32
      %v702 = vpop.permute.xlu0 %701
      %703 = vrot.lane.b32.xlu0 %v290, 32
      %v704 = vpop.permute.xlu0 %703
      %705 = vrot.lane.b32.xlu0 %v291, 32
      %v706 = vpop.permute.xlu0 %705
      %707 = vrot.lane.b32.xlu0 %v292, 32
      %v708 = vpop.permute.xlu0 %707
      %709 = vrot.lane.b32.xlu0 %v293, 32
      %v710 = vpop.permute.xlu0 %709
      %711 = vrot.lane.b32.xlu0 %v294, 32
      %v712 = vpop.permute.xlu0 %711
      %777 = vrot.lane.b32.xlu0 %v296, 48
      %v778 = vpop.permute.xlu0 %777
      %779 = vrot.lane.b32.xlu0 %v297, 48
      %v780 = vpop.permute.xlu0 %779
      %781 = vrot.lane.b32.xlu0 %v298, 48
      %v782 = vpop.permute.xlu0 %781
      %783 = vrot.lane.b32.xlu0 %v299, 48
      %v784 = vpop.permute.xlu0 %783
      %785 = vrot.lane.b32.xlu0 %v300, 48
      %v786 = vpop.permute.xlu0 %785
      %787 = vrot.lane.b32.xlu0 %v301, 48
      %v788 = vpop.permute.xlu0 %787
      %789 = vrot.lane.b32.xlu0 %v302, 48
      %v790 = vpop.permute.xlu0 %789
      %791 = vrot.lane.b32.xlu0 %v303, 48
      %v792 = vpop.permute.xlu0 %791
      %793 = vrot.lane.b32.xlu0 %v304, 48
      %v794 = vpop.permute.xlu0 %793
      %795 = vrot.lane.b32.xlu0 %v305, 48
      %v796 = vpop.permute.xlu0 %795
      %797 = vrot.lane.b32.xlu0 %v306, 48
      %v798 = vpop.permute.xlu0 %797
      %799 = vrot.lane.b32.xlu0 %v307, 48
      %v800 = vpop.permute.xlu0 %799
      %801 = vrot.lane.b32.xlu0 %v308, 48
      %v802 = vpop.permute.xlu0 %801
      %803 = vrot.lane.b32.xlu0 %v309, 48
      %v804 = vpop.permute.xlu0 %803
      %805 = vrot.lane.b32.xlu0 %v310, 48
      %v806 = vpop.permute.xlu0 %805
      %807 = vrot.lane.b32.xlu0 %v311, 48
      %v808 = vpop.permute.xlu0 %807
      %809 = vrot.lane.b32.xlu0 %v312, 48
      %v810 = vpop.permute.xlu0 %809
      %811 = vrot.lane.b32.xlu0 %v313, 48
      %v812 = vpop.permute.xlu0 %811
      %813 = vrot.lane.b32.xlu0 %v314, 48
      %v814 = vpop.permute.xlu0 %813
      %815 = vrot.lane.b32.xlu0 %v315, 48
      %v816 = vpop.permute.xlu0 %815
      %817 = vrot.lane.b32.xlu0 %v316, 48
      %v818 = vpop.permute.xlu0 %817
      %819 = vrot.lane.b32.xlu0 %v317, 48
      %v820 = vpop.permute.xlu0 %819
      %821 = vrot.lane.b32.xlu0 %v318, 48
      %v822 = vpop.permute.xlu0 %821
      %823 = vrot.lane.b32.xlu0 %v319, 48
      %v824 = vpop.permute.xlu0 %823
      %825 = vrot.lane.b32.xlu0 %v320, 48
      %v826 = vpop.permute.xlu0 %825
      %827 = vrot.lane.b32.xlu0 %v321, 48
      %v828 = vpop.permute.xlu0 %827
      %829 = vrot.lane.b32.xlu0 %v322, 48
      %v830 = vpop.permute.xlu0 %829
      %831 = vrot.lane.b32.xlu0 %v323, 48
      %v832 = vpop.permute.xlu0 %831
      %833 = vrot.lane.b32.xlu0 %v324, 48
      %v834 = vpop.permute.xlu0 %833
      %835 = vrot.lane.b32.xlu0 %v325, 48
      %v836 = vpop.permute.xlu0 %835
      %837 = vrot.lane.b32.xlu0 %v326, 48
      %v838 = vpop.permute.xlu0 %837
      %839 = vrot.lane.b32.xlu0 %v327, 48
      %v840 = vpop.permute.xlu0 %839
      %905 = vrot.lane.b32.xlu0 %v328, 64
      %v906 = vpop.permute.xlu0 %905
      %907 = vrot.lane.b32.xlu0 %v329, 64
      %v908 = vpop.permute.xlu0 %907
      %909 = vrot.lane.b32.xlu0 %v330, 64
      %v910 = vpop.permute.xlu0 %909
      %911 = vrot.lane.b32.xlu0 %v331, 64
      %v912 = vpop.permute.xlu0 %911
      %913 = vrot.lane.b32.xlu0 %v332, 64
      %v914 = vpop.permute.xlu0 %913
      %915 = vrot.lane.b32.xlu0 %v333, 64
      %v916 = vpop.permute.xlu0 %915
      %917 = vrot.lane.b32.xlu0 %v334, 64
      %v918 = vpop.permute.xlu0 %917
      %919 = vrot.lane.b32.xlu0 %v335, 64
      %v920 = vpop.permute.xlu0 %919
      %921 = vrot.lane.b32.xlu0 %v336, 64
      %v922 = vpop.permute.xlu0 %921
      %923 = vrot.lane.b32.xlu0 %v337, 64
      %v924 = vpop.permute.xlu0 %923
      %925 = vrot.lane.b32.xlu0 %v338, 64
      %v926 = vpop.permute.xlu0 %925
      %927 = vrot.lane.b32.xlu0 %v339, 64
      %v928 = vpop.permute.xlu0 %927
      %929 = vrot.lane.b32.xlu0 %v340, 64
      %v930 = vpop.permute.xlu0 %929
      %931 = vrot.lane.b32.xlu0 %v341, 64
      %v932 = vpop.permute.xlu0 %931
      %933 = vrot.lane.b32.xlu0 %v342, 64
      %v934 = vpop.permute.xlu0 %933
      %935 = vrot.lane.b32.xlu0 %v343, 64
      %v936 = vpop.permute.xlu0 %935
      %937 = vrot.lane.b32.xlu0 %v344, 64
      %v938 = vpop.permute.xlu0 %937
      %939 = vrot.lane.b32.xlu0 %v345, 64
      %v940 = vpop.permute.xlu0 %939
      %941 = vrot.lane.b32.xlu0 %v346, 64
      %v942 = vpop.permute.xlu0 %941
      %943 = vrot.lane.b32.xlu0 %v347, 64
      %v944 = vpop.permute.xlu0 %943
      %945 = vrot.lane.b32.xlu0 %v348, 64
      %v946 = vpop.permute.xlu0 %945
      %947 = vrot.lane.b32.xlu0 %v349, 64
      %v948 = vpop.permute.xlu0 %947
      %949 = vrot.lane.b32.xlu0 %v350, 64
      %v950 = vpop.permute.xlu0 %949
      %951 = vrot.lane.b32.xlu0 %v351, 64
      %v952 = vpop.permute.xlu0 %951
      %953 = vrot.lane.b32.xlu0 %v352, 64
      %v954 = vpop.permute.xlu0 %953
      %955 = vrot.lane.b32.xlu0 %v353, 64
      %v956 = vpop.permute.xlu0 %955
      %957 = vrot.lane.b32.xlu0 %v354, 64
      %v958 = vpop.permute.xlu0 %957
      %959 = vrot.lane.b32.xlu0 %v355, 64
      %v960 = vpop.permute.xlu0 %959
      %961 = vrot.lane.b32.xlu0 %v356, 64
      %v962 = vpop.permute.xlu0 %961
      %963 = vrot.lane.b32.xlu0 %v357, 64
      %v964 = vpop.permute.xlu0 %963
      %965 = vrot.lane.b32.xlu0 %v358, 64
      %v966 = vpop.permute.xlu0 %965
      %967 = vrot.lane.b32.xlu0 %v359, 64
      %v968 = vpop.permute.xlu0 %967
      %1033 = vrot.lane.b32.xlu0 %v360, 80
      %v1034 = vpop.permute.xlu0 %1033
      %1035 = vrot.lane.b32.xlu0 %v361, 80
      %v1036 = vpop.permute.xlu0 %1035
      %1037 = vrot.lane.b32.xlu0 %v362, 80
      %v1038 = vpop.permute.xlu0 %1037
      %1039 = vrot.lane.b32.xlu0 %v363, 80
      %v1040 = vpop.permute.xlu0 %1039
      %1041 = vrot.lane.b32.xlu0 %v364, 80
      %v1042 = vpop.permute.xlu0 %1041
      %1043 = vrot.lane.b32.xlu0 %v365, 80
      %v1044 = vpop.permute.xlu0 %1043
      %1045 = vrot.lane.b32.xlu0 %v366, 80
      %v1046 = vpop.permute.xlu0 %1045
      %1047 = vrot.lane.b32.xlu0 %v367, 80
      %v1048 = vpop.permute.xlu0 %1047
      %1049 = vrot.lane.b32.xlu0 %v368, 80
      %v1050 = vpop.permute.xlu0 %1049
      %1051 = vrot.lane.b32.xlu0 %v369, 80
      %v1052 = vpop.permute.xlu0 %1051
      %1053 = vrot.lane.b32.xlu0 %v370, 80
      %v1054 = vpop.permute.xlu0 %1053
      %1055 = vrot.lane.b32.xlu0 %v371, 80
      %v1056 = vpop.permute.xlu0 %1055
      %1057 = vrot.lane.b32.xlu0 %v372, 80
      %v1058 = vpop.permute.xlu0 %1057
      %1059 = vrot.lane.b32.xlu0 %v373, 80
      %v1060 = vpop.permute.xlu0 %1059
      %1061 = vrot.lane.b32.xlu0 %v374, 80
      %v1062 = vpop.permute.xlu0 %1061
      %1063 = vrot.lane.b32.xlu0 %v375, 80
      %v1064 = vpop.permute.xlu0 %1063
      %1065 = vrot.lane.b32.xlu0 %v376, 80
      %v1066 = vpop.permute.xlu0 %1065
      %1067 = vrot.lane.b32.xlu0 %v377, 80
      %v1068 = vpop.permute.xlu0 %1067
      %1069 = vrot.lane.b32.xlu0 %v378, 80
      %v1070 = vpop.permute.xlu0 %1069
      %1071 = vrot.lane.b32.xlu0 %v379, 80
      %v1072 = vpop.permute.xlu0 %1071
      %1073 = vrot.lane.b32.xlu0 %v380, 80
      %v1074 = vpop.permute.xlu0 %1073
      %1075 = vrot.lane.b32.xlu0 %v381, 80
      %v1076 = vpop.permute.xlu0 %1075
      %1077 = vrot.lane.b32.xlu0 %v382, 80
      %v1078 = vpop.permute.xlu0 %1077
      %1079 = vrot.lane.b32.xlu0 %v383, 80
      %v1080 = vpop.permute.xlu0 %1079
      %1081 = vrot.lane.b32.xlu0 %v384, 80
      %v1082 = vpop.permute.xlu0 %1081
      %1083 = vrot.lane.b32.xlu0 %v385, 80
      %v1084 = vpop.permute.xlu0 %1083
      %1085 = vrot.lane.b32.xlu0 %v386, 80
      %v1086 = vpop.permute.xlu0 %1085
      %1087 = vrot.lane.b32.xlu0 %v387, 80
      %v1088 = vpop.permute.xlu0 %1087
      %1089 = vrot.lane.b32.xlu0 %v388, 80
      %v1090 = vpop.permute.xlu0 %1089
      %1091 = vrot.lane.b32.xlu0 %v389, 80
      %v1092 = vpop.permute.xlu0 %1091
      %1093 = vrot.lane.b32.xlu0 %v390, 80
      %v1094 = vpop.permute.xlu0 %1093
      %1095 = vrot.lane.b32.xlu0 %v391, 80
      %v1096 = vpop.permute.xlu0 %1095
      %1161 = vrot.lane.b32.xlu0 %v393, 96
      %v1162 = vpop.permute.xlu0 %1161
      %1163 = vrot.lane.b32.xlu0 %v394, 96
      %v1164 = vpop.permute.xlu0 %1163
      %1165 = vrot.lane.b32.xlu0 %v395, 96
      %v1166 = vpop.permute.xlu0 %1165
      %1167 = vrot.lane.b32.xlu0 %v396, 96
      %v1168 = vpop.permute.xlu0 %1167
      %1169 = vrot.lane.b32.xlu0 %v397, 96
      %v1170 = vpop.permute.xlu0 %1169
      %1171 = vrot.lane.b32.xlu0 %v398, 96
      %v1172 = vpop.permute.xlu0 %1171
      %1173 = vrot.lane.b32.xlu0 %v399, 96
      %v1174 = vpop.permute.xlu0 %1173
      %1175 = vrot.lane.b32.xlu0 %v400, 96
      %v1176 = vpop.permute.xlu0 %1175
      %1177 = vrot.lane.b32.xlu0 %v401, 96
      %v1178 = vpop.permute.xlu0 %1177
      %1179 = vrot.lane.b32.xlu0 %v402, 96
      %v1180 = vpop.permute.xlu0 %1179
      %1181 = vrot.lane.b32.xlu0 %v403, 96
      %v1182 = vpop.permute.xlu0 %1181
      %1183 = vrot.lane.b32.xlu0 %v404, 96
      %v1184 = vpop.permute.xlu0 %1183
      %1185 = vrot.lane.b32.xlu0 %v405, 96
      %v1186 = vpop.permute.xlu0 %1185
      %1187 = vrot.lane.b32.xlu0 %v406, 96
      %v1188 = vpop.permute.xlu0 %1187
      %1189 = vrot.lane.b32.xlu0 %v407, 96
      %v1190 = vpop.permute.xlu0 %1189
      %1191 = vrot.lane.b32.xlu0 %v408, 96
      %v1192 = vpop.permute.xlu0 %1191
      %1193 = vrot.lane.b32.xlu0 %v409, 96
      %v1194 = vpop.permute.xlu0 %1193
      %1195 = vrot.lane.b32.xlu0 %v410, 96
      %v1196 = vpop.permute.xlu0 %1195
      %1197 = vrot.lane.b32.xlu0 %v411, 96
      %v1198 = vpop.permute.xlu0 %1197
      %1199 = vrot.lane.b32.xlu0 %v412, 96
      %v1200 = vpop.permute.xlu0 %1199
      %1201 = vrot.lane.b32.xlu0 %v413, 96
      %v1202 = vpop.permute.xlu0 %1201
      %1203 = vrot.lane.b32.xlu0 %v414, 96
      %v1204 = vpop.permute.xlu0 %1203
      %1205 = vrot.lane.b32.xlu0 %v415, 96
      %v1206 = vpop.permute.xlu0 %1205
      %1207 = vrot.lane.b32.xlu0 %v416, 96
      %v1208 = vpop.permute.xlu0 %1207
      %1209 = vrot.lane.b32.xlu0 %v417, 96
      %v1210 = vpop.permute.xlu0 %1209
      %1211 = vrot.lane.b32.xlu0 %v418, 96
      %v1212 = vpop.permute.xlu0 %1211
      %1213 = vrot.lane.b32.xlu0 %v419, 96
      %v1214 = vpop.permute.xlu0 %1213
      %1215 = vrot.lane.b32.xlu0 %v420, 96
      %v1216 = vpop.permute.xlu0 %1215
      %1217 = vrot.lane.b32.xlu0 %v421, 96
      %v1218 = vpop.permute.xlu0 %1217
      %1219 = vrot.lane.b32.xlu0 %v422, 96
      %v1220 = vpop.permute.xlu0 %1219
      %1221 = vrot.lane.b32.xlu0 %v423, 96
      %v1222 = vpop.permute.xlu0 %1221
      %1223 = vrot.lane.b32.xlu0 %v424, 96
      %v1224 = vpop.permute.xlu0 %1223
      %1289 = vrot.lane.b32.xlu0 %v425, 112
      %v1290 = vpop.permute.xlu0 %1289
      %1291 = vrot.lane.b32.xlu0 %v426, 112
      %v1292 = vpop.permute.xlu0 %1291
      %1293 = vrot.lane.b32.xlu0 %v427, 112
      %v1294 = vpop.permute.xlu0 %1293
      %1295 = vrot.lane.b32.xlu0 %v428, 112
      %v1296 = vpop.permute.xlu0 %1295
      %1297 = vrot.lane.b32.xlu0 %v429, 112
      %v1298 = vpop.permute.xlu0 %1297
      %1299 = vrot.lane.b32.xlu0 %v430, 112
      %v1300 = vpop.permute.xlu0 %1299
      %1301 = vrot.lane.b32.xlu0 %v431, 112
      %v1302 = vpop.permute.xlu0 %1301
      %1303 = vrot.lane.b32.xlu0 %v432, 112
      %v1304 = vpop.permute.xlu0 %1303
      %1305 = vrot.lane.b32.xlu0 %v433, 112
      %v1306 = vpop.permute.xlu0 %1305
      %1307 = vrot.lane.b32.xlu0 %v434, 112
      %v1308 = vpop.permute.xlu0 %1307
      %1309 = vrot.lane.b32.xlu0 %v435, 112
      %v1310 = vpop.permute.xlu0 %1309
      %1311 = vrot.lane.b32.xlu0 %v436, 112
      %v1312 = vpop.permute.xlu0 %1311
      %1313 = vrot.lane.b32.xlu0 %v437, 112
      %v1314 = vpop.permute.xlu0 %1313
      %1315 = vrot.lane.b32.xlu0 %v438, 112
      %v1316 = vpop.permute.xlu0 %1315
      %1317 = vrot.lane.b32.xlu0 %v439, 112
      %v1318 = vpop.permute.xlu0 %1317
      %1319 = vrot.lane.b32.xlu0 %v440, 112
      %v1320 = vpop.permute.xlu0 %1319
      %1321 = vrot.lane.b32.xlu0 %v441, 112
      %v1322 = vpop.permute.xlu0 %1321
      %1323 = vrot.lane.b32.xlu0 %v442, 112
      %v1324 = vpop.permute.xlu0 %1323
      %1325 = vrot.lane.b32.xlu0 %v443, 112
      %v1326 = vpop.permute.xlu0 %1325
      %1327 = vrot.lane.b32.xlu0 %v444, 112
      %v1328 = vpop.permute.xlu0 %1327
      %1329 = vrot.lane.b32.xlu0 %v445, 112
      %v1330 = vpop.permute.xlu0 %1329
      %1331 = vrot.lane.b32.xlu0 %v446, 112
      %v1332 = vpop.permute.xlu0 %1331
      %1333 = vrot.lane.b32.xlu0 %v447, 112
      %v1334 = vpop.permute.xlu0 %1333
      %1335 = vrot.lane.b32.xlu0 %v448, 112
      %v1336 = vpop.permute.xlu0 %1335
      %1337 = vrot.lane.b32.xlu0 %v449, 112
      %v1338 = vpop.permute.xlu0 %1337
      %1339 = vrot.lane.b32.xlu0 %v450, 112
      %v1340 = vpop.permute.xlu0 %1339
      %1341 = vrot.lane.b32.xlu0 %v451, 112
      %v1342 = vpop.permute.xlu0 %1341
      %1343 = vrot.lane.b32.xlu0 %v452, 112
      %v1344 = vpop.permute.xlu0 %1343
      %1345 = vrot.lane.b32.xlu0 %v453, 112
      %v1346 = vpop.permute.xlu0 %1345
      %1347 = vrot.lane.b32.xlu0 %v454, 112
      %v1348 = vpop.permute.xlu0 %1347
      %1349 = vrot.lane.b32.xlu0 %v455, 112
      %v1350 = vpop.permute.xlu0 %1349
      %1351 = vrot.lane.b32.xlu0 %v456, 112
      %v1352 = vpop.permute.xlu0 %1351
      %vm1385 = vcmask 130048
      %v1386 = vsel %vm1385, %v199, %v522
      %v1387 = vsel %vm1385, %v200, %v524
      %v1388 = vsel %vm1385, %v201, %v526
      %v1389 = vsel %vm1385, %v202, %v528
      %v1390 = vsel %vm1385, %v203, %v530
      %v1391 = vsel %vm1385, %v204, %v532
      %v1392 = vsel %vm1385, %v205, %v534
      %v1393 = vsel %vm1385, %v206, %v536
      %v1394 = vsel %vm1385, %v207, %v538
      %v1395 = vsel %vm1385, %v208, %v540
      %v1396 = vsel %vm1385, %v209, %v542
      %v1397 = vsel %vm1385, %v210, %v544
      %v1398 = vsel %vm1385, %v211, %v546
      %v1399 = vsel %vm1385, %v212, %v548
      %v1400 = vsel %vm1385, %v213, %v550
      %v1401 = vsel %vm1385, %v214, %v552
      %v1402 = vsel %vm1385, %v215, %v554
      %v1403 = vsel %vm1385, %v216, %v556
      %v1404 = vsel %vm1385, %v217, %v558
      %v1405 = vsel %vm1385, %v218, %v560
      %v1406 = vsel %vm1385, %v219, %v562
      %v1407 = vsel %vm1385, %v220, %v564
      %v1408 = vsel %vm1385, %v221, %v566
      %v1409 = vsel %vm1385, %v222, %v568
      %v1410 = vsel %vm1385, %v223, %v570
      %v1411 = vsel %vm1385, %v224, %v572
      %v1412 = vsel %vm1385, %v225, %v574
      %v1413 = vsel %vm1385, %v226, %v576
      %v1414 = vsel %vm1385, %v227, %v578
      %v1415 = vsel %vm1385, %v228, %v580
      %v1416 = vsel %vm1385, %v229, %v582
      %v1417 = vsel %vm1385, %v230, %v584
      %vm1418 = vcmask 261120
      %v1419 = vsel %vm1418, %v1386, %v650
      %v1420 = vsel %vm1418, %v1387, %v652
      %v1421 = vsel %vm1418, %v1388, %v654
      %v1422 = vsel %vm1418, %v1389, %v656
      %v1423 = vsel %vm1418, %v1390, %v658
      %v1424 = vsel %vm1418, %v1391, %v660
      %v1425 = vsel %vm1418, %v1392, %v662
      %v1426 = vsel %vm1418, %v1393, %v664
      %v1427 = vsel %vm1418, %v1394, %v666
      %v1428 = vsel %vm1418, %v1395, %v668
      %v1429 = vsel %vm1418, %v1396, %v670
      %v1430 = vsel %vm1418, %v1397, %v672
      %v1431 = vsel %vm1418, %v1398, %v674
      %v1432 = vsel %vm1418, %v1399, %v676
      %v1433 = vsel %vm1418, %v1400, %v678
      %v1434 = vsel %vm1418, %v1401, %v680
      %v1435 = vsel %vm1418, %v1402, %v682
      %v1436 = vsel %vm1418, %v1403, %v684
      %v1437 = vsel %vm1418, %v1404, %v686
      %v1438 = vsel %vm1418, %v1405, %v688
      %v1439 = vsel %vm1418, %v1406, %v690
      %v1440 = vsel %vm1418, %v1407, %v692
      %v1441 = vsel %vm1418, %v1408, %v694
      %v1442 = vsel %vm1418, %v1409, %v696
      %v1443 = vsel %vm1418, %v1410, %v698
      %v1444 = vsel %vm1418, %v1411, %v700
      %v1445 = vsel %vm1418, %v1412, %v702
      %v1446 = vsel %vm1418, %v1413, %v704
      %v1447 = vsel %vm1418, %v1414, %v706
      %v1448 = vsel %vm1418, %v1415, %v708
      %v1449 = vsel %vm1418, %v1416, %v710
      %v1450 = vsel %vm1418, %v1417, %v712
      %vm1451 = vcmask 392192
      %v1452 = vsel %vm1451, %v1419, %v778
      %v1453 = vsel %vm1451, %v1420, %v780
      %v1454 = vsel %vm1451, %v1421, %v782
      %v1455 = vsel %vm1451, %v1422, %v784
      %v1456 = vsel %vm1451, %v1423, %v786
      %v1457 = vsel %vm1451, %v1424, %v788
      %v1458 = vsel %vm1451, %v1425, %v790
      %v1459 = vsel %vm1451, %v1426, %v792
      %v1460 = vsel %vm1451, %v1427, %v794
      %v1461 = vsel %vm1451, %v1428, %v796
      %v1462 = vsel %vm1451, %v1429, %v798
      %v1463 = vsel %vm1451, %v1430, %v800
      %v1464 = vsel %vm1451, %v1431, %v802
      %v1465 = vsel %vm1451, %v1432, %v804
      %v1466 = vsel %vm1451, %v1433, %v806
      %v1467 = vsel %vm1451, %v1434, %v808
      %v1468 = vsel %vm1451, %v1435, %v810
      %v1469 = vsel %vm1451, %v1436, %v812
      %v1470 = vsel %vm1451, %v1437, %v814
      %v1471 = vsel %vm1451, %v1438, %v816
      %v1472 = vsel %vm1451, %v1439, %v818
      %v1473 = vsel %vm1451, %v1440, %v820
      %v1474 = vsel %vm1451, %v1441, %v822
      %v1475 = vsel %vm1451, %v1442, %v824
      %v1476 = vsel %vm1451, %v1443, %v826
      %v1477 = vsel %vm1451, %v1444, %v828
      %v1478 = vsel %vm1451, %v1445, %v830
      %v1479 = vsel %vm1451, %v1446, %v832
      %v1480 = vsel %vm1451, %v1447, %v834
      %v1481 = vsel %vm1451, %v1448, %v836
      %v1482 = vsel %vm1451, %v1449, %v838
      %v1483 = vsel %vm1451, %v1450, %v840
      %vm1484 = vcmask 523264
      %v1485 = vsel %vm1484, %v1452, %v906
      %v1486 = vsel %vm1484, %v1453, %v908
      %v1487 = vsel %vm1484, %v1454, %v910
      %v1488 = vsel %vm1484, %v1455, %v912
      %v1489 = vsel %vm1484, %v1456, %v914
      %v1490 = vsel %vm1484, %v1457, %v916
      %v1491 = vsel %vm1484, %v1458, %v918
      %v1492 = vsel %vm1484, %v1459, %v920
      %v1493 = vsel %vm1484, %v1460, %v922
      %v1494 = vsel %vm1484, %v1461, %v924
      %v1495 = vsel %vm1484, %v1462, %v926
      %v1496 = vsel %vm1484, %v1463, %v928
      %v1497 = vsel %vm1484, %v1464, %v930
      %v1498 = vsel %vm1484, %v1465, %v932
      %v1499 = vsel %vm1484, %v1466, %v934
      %v1500 = vsel %vm1484, %v1467, %v936
      %v1501 = vsel %vm1484, %v1468, %v938
      %v1502 = vsel %vm1484, %v1469, %v940
      %v1503 = vsel %vm1484, %v1470, %v942
      %v1504 = vsel %vm1484, %v1471, %v944
      %v1505 = vsel %vm1484, %v1472, %v946
      %v1506 = vsel %vm1484, %v1473, %v948
      %v1507 = vsel %vm1484, %v1474, %v950
      %v1508 = vsel %vm1484, %v1475, %v952
      %v1509 = vsel %vm1484, %v1476, %v954
      %v1510 = vsel %vm1484, %v1477, %v956
      %v1511 = vsel %vm1484, %v1478, %v958
      %v1512 = vsel %vm1484, %v1479, %v960
      %v1513 = vsel %vm1484, %v1480, %v962
      %v1514 = vsel %vm1484, %v1481, %v964
      %v1515 = vsel %vm1484, %v1482, %v966
      %v1516 = vsel %vm1484, %v1483, %v968
      %vm1517 = vcmask 654336
      %v1518 = vsel %vm1517, %v1485, %v1034
      %v1519 = vsel %vm1517, %v1486, %v1036
      %v1520 = vsel %vm1517, %v1487, %v1038
      %v1521 = vsel %vm1517, %v1488, %v1040
      %v1522 = vsel %vm1517, %v1489, %v1042
      %v1523 = vsel %vm1517, %v1490, %v1044
      %v1524 = vsel %vm1517, %v1491, %v1046
      %v1525 = vsel %vm1517, %v1492, %v1048
      %v1526 = vsel %vm1517, %v1493, %v1050
      %v1527 = vsel %vm1517, %v1494, %v1052
      %v1528 = vsel %vm1517, %v1495, %v1054
      %v1529 = vsel %vm1517, %v1496, %v1056
      %v1530 = vsel %vm1517, %v1497, %v1058
      %v1531 = vsel %vm1517, %v1498, %v1060
      %v1532 = vsel %vm1517, %v1499, %v1062
      %v1533 = vsel %vm1517, %v1500, %v1064
      %v1534 = vsel %vm1517, %v1501, %v1066
      %v1535 = vsel %vm1517, %v1502, %v1068
      %v1536 = vsel %vm1517, %v1503, %v1070
      %v1537 = vsel %vm1517, %v1504, %v1072
      %v1538 = vsel %vm1517, %v1505, %v1074
      %v1539 = vsel %vm1517, %v1506, %v1076
      %v1540 = vsel %vm1517, %v1507, %v1078
      %v1541 = vsel %vm1517, %v1508, %v1080
      %v1542 = vsel %vm1517, %v1509, %v1082
      %v1543 = vsel %vm1517, %v1510, %v1084
      %v1544 = vsel %vm1517, %v1511, %v1086
      %v1545 = vsel %vm1517, %v1512, %v1088
      %v1546 = vsel %vm1517, %v1513, %v1090
      %v1547 = vsel %vm1517, %v1514, %v1092
      %v1548 = vsel %vm1517, %v1515, %v1094
      %v1549 = vsel %vm1517, %v1516, %v1096
      %vm1550 = vcmask 785408
      %v1551 = vsel %vm1550, %v1518, %v1162
      %v1552 = vsel %vm1550, %v1519, %v1164
      %v1553 = vsel %vm1550, %v1520, %v1166
      %v1554 = vsel %vm1550, %v1521, %v1168
      %v1555 = vsel %vm1550, %v1522, %v1170
      %v1556 = vsel %vm1550, %v1523, %v1172
      %v1557 = vsel %vm1550, %v1524, %v1174
      %v1558 = vsel %vm1550, %v1525, %v1176
      %v1559 = vsel %vm1550, %v1526, %v1178
      %v1560 = vsel %vm1550, %v1527, %v1180
      %v1561 = vsel %vm1550, %v1528, %v1182
      %v1562 = vsel %vm1550, %v1529, %v1184
      %v1563 = vsel %vm1550, %v1530, %v1186
      %v1564 = vsel %vm1550, %v1531, %v1188
      %v1565 = vsel %vm1550, %v1532, %v1190
      %v1566 = vsel %vm1550, %v1533, %v1192
      %v1567 = vsel %vm1550, %v1534, %v1194
      %v1568 = vsel %vm1550, %v1535, %v1196
      %v1569 = vsel %vm1550, %v1536, %v1198
      %v1570 = vsel %vm1550, %v1537, %v1200
      %v1571 = vsel %vm1550, %v1538, %v1202
      %v1572 = vsel %vm1550, %v1539, %v1204
      %v1573 = vsel %vm1550, %v1540, %v1206
      %v1574 = vsel %vm1550, %v1541, %v1208
      %v1575 = vsel %vm1550, %v1542, %v1210
      %v1576 = vsel %vm1550, %v1543, %v1212
      %v1577 = vsel %vm1550, %v1544, %v1214
      %v1578 = vsel %vm1550, %v1545, %v1216
      %v1579 = vsel %vm1550, %v1546, %v1218
      %v1580 = vsel %vm1550, %v1547, %v1220
      %v1581 = vsel %vm1550, %v1548, %v1222
      %v1582 = vsel %vm1550, %v1549, %v1224
      %vm1583 = vcmask 916480
      %v1584 = vsel %vm1583, %v1551, %v1290
      %v1585 = vsel %vm1583, %v1552, %v1292
      %v1586 = vsel %vm1583, %v1553, %v1294
      %v1587 = vsel %vm1583, %v1554, %v1296
      %v1588 = vsel %vm1583, %v1555, %v1298
      %v1589 = vsel %vm1583, %v1556, %v1300
      %v1590 = vsel %vm1583, %v1557, %v1302
      %v1591 = vsel %vm1583, %v1558, %v1304
      %v1592 = vsel %vm1583, %v1559, %v1306
      %v1593 = vsel %vm1583, %v1560, %v1308
      %v1594 = vsel %vm1583, %v1561, %v1310
      %v1595 = vsel %vm1583, %v1562, %v1312
      %v1596 = vsel %vm1583, %v1563, %v1314
      %v1597 = vsel %vm1583, %v1564, %v1316
      %v1598 = vsel %vm1583, %v1565, %v1318
      %v1599 = vsel %vm1583, %v1566, %v1320
      %v1600 = vsel %vm1583, %v1567, %v1322
      %v1601 = vsel %vm1583, %v1568, %v1324
      %v1602 = vsel %vm1583, %v1569, %v1326
      %v1603 = vsel %vm1583, %v1570, %v1328
      %v1604 = vsel %vm1583, %v1571, %v1330
      %v1605 = vsel %vm1583, %v1572, %v1332
      %v1606 = vsel %vm1583, %v1573, %v1334
      %v1607 = vsel %vm1583, %v1574, %v1336
      %v1608 = vsel %vm1583, %v1575, %v1338
      %v1609 = vsel %vm1583, %v1576, %v1340
      %v1610 = vsel %vm1583, %v1577, %v1342
      %v1611 = vsel %vm1583, %v1578, %v1344
      %v1612 = vsel %vm1583, %v1579, %v1346
      %v1613 = vsel %vm1583, %v1580, %v1348
      %v1614 = vsel %vm1583, %v1581, %v1350
      %v1615 = vsel %vm1583, %v1582, %v1352
      %v1616 = vpack.c.bf16 %v1585, %v1584
      %v1617 = vpack.c.bf16 %v458, %v457
      %v1618 = vpack.c.bf16 %v1587, %v1586
      %v1619 = vpack.c.bf16 %v460, %v459
      %v1620 = vpack.c.bf16 %v1589, %v1588
      %v1621 = vpack.c.bf16 %v462, %v461
      %v1622 = vpack.c.bf16 %v1591, %v1590
      %v1623 = vpack.c.bf16 %v464, %v463
      %v1624 = vpack.c.bf16 %v1593, %v1592
      %v1625 = vpack.c.bf16 %v466, %v465
      %v1626 = vpack.c.bf16 %v1595, %v1594
      %v1627 = vpack.c.bf16 %v468, %v467
      %v1628 = vpack.c.bf16 %v1597, %v1596
      %v1629 = vpack.c.bf16 %v470, %v469
      %v1630 = vpack.c.bf16 %v1599, %v1598
      %v1631 = vpack.c.bf16 %v472, %v471
      %v1632 = vpack.c.bf16 %v1601, %v1600
      %v1633 = vpack.c.bf16 %v474, %v473
      %v1634 = vpack.c.bf16 %v1603, %v1602
      %v1635 = vpack.c.bf16 %v476, %v475
      %v1636 = vpack.c.bf16 %v1605, %v1604
      %v1637 = vpack.c.bf16 %v478, %v477
      %v1638 = vpack.c.bf16 %v1607, %v1606
      %v1639 = vpack.c.bf16 %v480, %v479
      %v1640 = vpack.c.bf16 %v1609, %v1608
      %v1641 = vpack.c.bf16 %v482, %v481
      %v1642 = vpack.c.bf16 %v1611, %v1610
      %v1643 = vpack.c.bf16 %v484, %v483
      %v1644 = vpack.c.bf16 %v1613, %v1612
      %v1645 = vpack.c.bf16 %v486, %v485
      %v1646 = vpack.c.bf16 %v1615, %v1614
      %v1647 = vpack.c.bf16 %v488, %v487
      %v1648 = vld [vmem:[%s1] sm:$0xf]
      %v1649 = vld [vmem:[%s1 + $0x4] sm:$0xf]
      %v1650 = vld [vmem:[%s1 + $0x8] sm:$0xf]
      %v1651 = vld [vmem:[%s1 + $0xc] sm:$0xf]
      %v1652 = vld [vmem:[%s1 + $0x10] sm:$0xf]
      %v1653 = vld [vmem:[%s1 + $0x14] sm:$0xf]
      %v1654 = vld [vmem:[%s1 + $0x18] sm:$0xf]
      %v1655 = vld [vmem:[%s1 + $0x1c] sm:$0xf]
      %v1656 = vld [vmem:[%s1 + $0x20] sm:$0xf]
      %v1657 = vld [vmem:[%s1 + $0x24] sm:$0xf]
      %v1658 = vld [vmem:[%s1 + $0x28] sm:$0xf]
      %v1659 = vld [vmem:[%s1 + $0x2c] sm:$0xf]
      %v1660 = vld [vmem:[%s1 + $0x30] sm:$0xf]
      %v1661 = vld [vmem:[%s1 + $0x34] sm:$0xf]
      %v1662 = vld [vmem:[%s1 + $0x38] sm:$0xf]
      %v1663 = vld [vmem:[%s1 + $0x3c] sm:$0xf]
      %v1664 = vld [vmem:[%s1 + $0x40] sm:$0xf]
      %v1665 = vld [vmem:[%s1 + $0x44] sm:$0xf]
      %v1684 = vunpack.c.l.b16 %v1648
      %v1685 = vunpack.c.l.b16 %v1649
      %v1686 = vunpack.c.l.b16 %v1650
      %v1687 = vunpack.c.l.b16 %v1651
      %v1688 = vunpack.c.l.b16 %v1652
      %v1689 = vunpack.c.l.b16 %v1653
      %v1690 = vunpack.c.l.b16 %v1654
      %v1691 = vunpack.c.l.b16 %v1655
      %v1692 = vunpack.c.l.b16 %v1656
      %v1693 = vunpack.c.l.b16 %v1657
      %v1694 = vunpack.c.l.b16 %v1658
      %v1695 = vunpack.c.l.b16 %v1659
      %v1696 = vunpack.c.l.b16 %v1660
      %v1697 = vunpack.c.l.b16 %v1661
      %v1698 = vunpack.c.l.b16 %v1662
      %v1699 = vunpack.c.l.b16 %v1663
      %v1700 = vunpack.c.l.b16 %v1664
      %v1701 = vunpack.c.l.b16 %v1665
      %v1702 = vpack.c.b16 %v1685, %v1684
      %v1703 = vpack.c.b16 %v1687, %v1686
      %v1704 = vpack.c.b16 %v1689, %v1688
      %v1705 = vpack.c.b16 %v1691, %v1690
      %v1706 = vpack.c.b16 %v1693, %v1692
      %v1707 = vpack.c.b16 %v1695, %v1694
      %v1708 = vpack.c.b16 %v1697, %v1696
      %v1709 = vpack.c.b16 %v1699, %v1698
      %v1710 = vpack.c.b16 %v1701, %v1700
      %v1721 = vsel %vm1385, %v1617, 0
      %v1724 = vsel %vm1385, %v1619, 0
      %v1727 = vsel %vm1385, %v1621, 0
      %v1730 = vsel %vm1385, %v1623, 0
      %v1733 = vsel %vm1385, %v1625, 0
      %v1736 = vsel %vm1385, %v1627, 0
      %v1739 = vsel %vm1385, %v1629, 0
      %v1742 = vsel %vm1385, %v1631, 0
      %v1745 = vsel %vm1385, %v1633, 0
      %v1748 = vsel %vm1385, %v1635, 0
      %v1751 = vsel %vm1385, %v1637, 0
      %v1754 = vsel %vm1385, %v1639, 0
      %v1757 = vsel %vm1385, %v1641, 0
      %v1760 = vsel %vm1385, %v1643, 0
      %v1763 = vsel %vm1385, %v1645, 0
      %v1766 = vsel %vm1385, %v1647, 0
      %1768 = vmatprep.subr.bf16.mxu0 0
      %1769 = vmatpush1.bf16.msra.mxu0 %v1702
      %1770 = vmatprep.subr.bf16.mxu0 0
      %1771 = vmatpush1.bf16.msra.mxu0 %v1703
      %1772 = vmatprep.subr.bf16.mxu0 0
      %1773 = vmatpush1.bf16.msra.mxu0 %v1704
      %1774 = vmatprep.subr.bf16.mxu0 0
      %1775 = vmatpush1.bf16.msra.mxu0 %v1705
      %1776 = vmatprep.subr.bf16.mxu0 0
      %1777 = vmatpush1.bf16.msra.mxu0 %v1706
      %1778 = vmatprep.subr.bf16.mxu0 0
      %1779 = vmatpush1.bf16.msra.mxu0 %v1707
      %1780 = vmatprep.subr.bf16.mxu0 0
      %1781 = vmatpush1.bf16.msra.mxu0 %v1708
      %1782 = vmatprep.subr.bf16.mxu0 0
      %1783 = vmatpush1.bf16.msra.mxu0 %v1709
      %1784 = vmatprep.subr.bf16.mxu0 0
      %1785 = vmatpush1.bf16.msra.mxu0 %v1710
      %1786 = vmatprep.subr.bf16.mxu0 0
      %1787 = vmatpush1.bf16.msra.mxu0 0
      %1788 = vmatprep.subr.bf16.mxu0 0
      %1789 = vmatpush1.bf16.msra.mxu0 0
      %1790 = vmatprep.subr.bf16.mxu0 0
      %1791 = vmatpush1.bf16.msra.mxu0 0
      %1792 = vmatprep.subr.bf16.mxu0 0
      %1793 = vmatpush1.bf16.msra.mxu0 0
      %1794 = vmatprep.subr.bf16.mxu0 0
      %1795 = vmatpush1.bf16.msra.mxu0 0
      %1796 = vmatprep.subr.bf16.mxu0 0
      %1797 = vmatpush1.bf16.msra.mxu0 0
      %1798 = vmatprep.subr.bf16.mxu0 0
      %1799 = vmatpush1.bf16.msra.mxu0 0
      %1800 = vmatprep.mubr.bf16.mxu0 %v1721
      %1801 = vmatmul.mubr.bf16.gmra.mrb[0].mxu0 %v1616
      %v1802 = vpop.f32.mrb[0].mxu0
      %v1803 = vadd.f32 0.0, %v1802
      %v1804 = vpop.f32.mrb[0].mxu0
      %v1805 = vpop.f32.mrb[0].mxu0
      %v1806 = vadd.f32 0.0, %v1805
      %v1807 = vpop.f32.mrb[0].mxu0
      %1808 = vmatprep.mubr.bf16.mxu0 %v1724
      %1809 = vmatmul.mubr.bf16.gmra.mrb[0].mxu0 %v1618
      %v1810 = vpop.f32.mrb[0].mxu0
      %v1811 = vadd.f32 0.0, %v1810
      %v1812 = vpop.f32.mrb[0].mxu0
      %v1813 = vpop.f32.mrb[0].mxu0
      %v1814 = vadd.f32 0.0, %v1813
      %v1815 = vpop.f32.mrb[0].mxu0
      %1816 = vmatprep.mubr.bf16.mxu0 %v1727
      %1817 = vmatmul.mubr.bf16.gmra.mrb[0].mxu0 %v1620
      %v1818 = vpop.f32.mrb[0].mxu0
      %v1819 = vadd.f32 0.0, %v1818
      %v1820 = vpop.f32.mrb[0].mxu0
      %v1821 = vpop.f32.mrb[0].mxu0
      %v1822 = vadd.f32 0.0, %v1821
      %v1823 = vpop.f32.mrb[0].mxu0
      %1824 = vmatprep.mubr.bf16.mxu0 %v1730
      %1825 = vmatmul.mubr.bf16.gmra.mrb[0].mxu0 %v1622
      %v1826 = vpop.f32.mrb[0].mxu0
      %v1827 = vadd.f32 0.0, %v1826
      %v1828 = vpop.f32.mrb[0].mxu0
      %v1829 = vpop.f32.mrb[0].mxu0
      %v1830 = vadd.f32 0.0, %v1829
      %v1831 = vpop.f32.mrb[0].mxu0
      %1832 = vmatprep.mubr.bf16.mxu0 %v1733
      %1833 = vmatmul.mubr.bf16.gmra.mrb[0].mxu0 %v1624
      %v1834 = vpop.f32.mrb[0].mxu0
      %v1835 = vadd.f32 0.0, %v1834
      %v1836 = vpop.f32.mrb[0].mxu0
      %v1837 = vpop.f32.mrb[0].mxu0
      %v1838 = vadd.f32 0.0, %v1837
      %v1839 = vpop.f32.mrb[0].mxu0
      %1840 = vmatprep.mubr.bf16.mxu0 %v1736
      %1841 = vmatmul.mubr.bf16.gmra.mrb[0].mxu0 %v1626
      %v1842 = vpop.f32.mrb[0].mxu0
      %v1843 = vadd.f32 0.0, %v1842
      %v1844 = vpop.f32.mrb[0].mxu0
      %v1845 = vpop.f32.mrb[0].mxu0
      %v1846 = vadd.f32 0.0, %v1845
      %v1847 = vpop.f32.mrb[0].mxu0
      %1848 = vmatprep.mubr.bf16.mxu0 %v1739
      %1849 = vmatmul.mubr.bf16.gmra.mrb[0].mxu0 %v1628
      %v1850 = vpop.f32.mrb[0].mxu0
      %v1851 = vadd.f32 0.0, %v1850
      %v1852 = vpop.f32.mrb[0].mxu0
      %v1853 = vpop.f32.mrb[0].mxu0
      %v1854 = vadd.f32 0.0, %v1853
      %v1855 = vpop.f32.mrb[0].mxu0
      %1856 = vmatprep.mubr.bf16.mxu0 %v1742
      %1857 = vmatmul.mubr.bf16.gmra.mrb[0].mxu0 %v1630
      %v1858 = vpop.f32.mrb[0].mxu0
      %v1859 = vadd.f32 0.0, %v1858
      %v1860 = vpop.f32.mrb[0].mxu0
      %v1861 = vpop.f32.mrb[0].mxu0
      %v1862 = vadd.f32 0.0, %v1861
      %v1863 = vpop.f32.mrb[0].mxu0
      %1864 = vmatprep.mubr.bf16.mxu0 %v1745
      %1865 = vmatmul.mubr.bf16.gmra.mrb[0].mxu0 %v1632
      %v1866 = vpop.f32.mrb[0].mxu0
      %v1867 = vadd.f32 0.0, %v1866
      %v1868 = vpop.f32.mrb[0].mxu0
      %v1869 = vpop.f32.mrb[0].mxu0
      %v1870 = vadd.f32 0.0, %v1869
      %v1871 = vpop.f32.mrb[0].mxu0
      %1872 = vmatprep.mubr.bf16.mxu0 %v1748
      %1873 = vmatmul.mubr.bf16.gmra.mrb[0].mxu0 %v1634
      %v1874 = vpop.f32.mrb[0].mxu0
      %v1875 = vadd.f32 0.0, %v1874
      %v1876 = vpop.f32.mrb[0].mxu0
      %v1877 = vpop.f32.mrb[0].mxu0
      %v1878 = vadd.f32 0.0, %v1877
      %v1879 = vpop.f32.mrb[0].mxu0
      %1880 = vmatprep.mubr.bf16.mxu0 %v1751
      %1881 = vmatmul.mubr.bf16.gmra.mrb[0].mxu0 %v1636
      %v1882 = vpop.f32.mrb[0].mxu0
      %v1883 = vadd.f32 0.0, %v1882
      %v1884 = vpop.f32.mrb[0].mxu0
      %v1885 = vpop.f32.mrb[0].mxu0
      %v1886 = vadd.f32 0.0, %v1885
      %v1887 = vpop.f32.mrb[0].mxu0
      %1888 = vmatprep.mubr.bf16.mxu0 %v1754
      %1889 = vmatmul.mubr.bf16.gmra.mrb[0].mxu0 %v1638
      %v1890 = vpop.f32.mrb[0].mxu0
      %v1891 = vadd.f32 0.0, %v1890
      %v1892 = vpop.f32.mrb[0].mxu0
      %v1893 = vpop.f32.mrb[0].mxu0
      %v1894 = vadd.f32 0.0, %v1893
      %v1895 = vpop.f32.mrb[0].mxu0
      %1896 = vmatprep.mubr.bf16.mxu0 %v1757
      %1897 = vmatmul.mubr.bf16.gmra.mrb[0].mxu0 %v1640
      %v1898 = vpop.f32.mrb[0].mxu0
      %v1899 = vadd.f32 0.0, %v1898
      %v1900 = vpop.f32.mrb[0].mxu0
      %v1901 = vpop.f32.mrb[0].mxu0
      %v1902 = vadd.f32 0.0, %v1901
      %v1903 = vpop.f32.mrb[0].mxu0
      %1904 = vmatprep.mubr.bf16.mxu0 %v1760
      %1905 = vmatmul.mubr.bf16.gmra.mrb[0].mxu0 %v1642
      %v1906 = vpop.f32.mrb[0].mxu0
      %v1907 = vadd.f32 0.0, %v1906
      %v1908 = vpop.f32.mrb[0].mxu0
      %v1909 = vpop.f32.mrb[0].mxu0
      %v1910 = vadd.f32 0.0, %v1909
      %v1911 = vpop.f32.mrb[0].mxu0
      %1912 = vmatprep.mubr.bf16.mxu0 %v1763
      %1913 = vmatmul.mubr.bf16.gmra.mrb[0].mxu0 %v1644
      %v1914 = vpop.f32.mrb[0].mxu0
      %v1915 = vadd.f32 0.0, %v1914
      %v1916 = vpop.f32.mrb[0].mxu0
      %v1917 = vpop.f32.mrb[0].mxu0
      %v1918 = vadd.f32 0.0, %v1917
      %v1919 = vpop.f32.mrb[0].mxu0
      %1920 = vmatprep.mubr.bf16.mxu0 %v1766
      %1921 = vmatmul.mubr.bf16.gmra.mrb[0].mxu0 %v1646
      %v1922 = vpop.f32.mrb[0].mxu0
      %v1923 = vadd.f32 0.0, %v1922
      %v1924 = vpop.f32.mrb[0].mxu0
      %v1925 = vpop.f32.mrb[0].mxu0
      %v1926 = vadd.f32 0.0, %v1925
      %v1927 = vpop.f32.mrb[0].mxu0
      %1928 = vdwg.mxu0
      %v1929 = vmax.f32 %v1803, 0.0
      %v1930 = vmax.f32 %v1806, 0.0
      %v1931 = vmax.f32 %v1811, 0.0
      %v1932 = vmax.f32 %v1814, 0.0
      %v1933 = vmax.f32 %v1819, 0.0
      %v1934 = vmax.f32 %v1822, 0.0
      %v1935 = vmax.f32 %v1827, 0.0
      %v1936 = vmax.f32 %v1830, 0.0
      %v1937 = vmax.f32 %v1835, 0.0
      %v1938 = vmax.f32 %v1838, 0.0
      %v1939 = vmax.f32 %v1843, 0.0
      %v1940 = vmax.f32 %v1846, 0.0
      %v1941 = vmax.f32 %v1851, 0.0
      %v1942 = vmax.f32 %v1854, 0.0
      %v1943 = vmax.f32 %v1859, 0.0
      %v1944 = vmax.f32 %v1862, 0.0
      %v1945 = vmax.f32 %v1867, 0.0
      %v1946 = vmax.f32 %v1870, 0.0
      %v1947 = vmax.f32 %v1875, 0.0
      %v1948 = vmax.f32 %v1878, 0.0
      %v1949 = vmax.f32 %v1883, 0.0
      %v1950 = vmax.f32 %v1886, 0.0
      %v1951 = vmax.f32 %v1891, 0.0
      %v1952 = vmax.f32 %v1894, 0.0
      %v1953 = vmax.f32 %v1899, 0.0
      %v1954 = vmax.f32 %v1902, 0.0
      %v1955 = vmax.f32 %v1907, 0.0
      %v1956 = vmax.f32 %v1910, 0.0
      %v1957 = vmax.f32 %v1915, 0.0
      %v1958 = vmax.f32 %v1918, 0.0
      %v1959 = vmax.f32 %v1923, 0.0
      %v1960 = vmax.f32 %v1926, 0.0
      %v1961 = vpack.c.bf16 %v1930, %v1929
      %v1962 = vpack.c.bf16 %v1932, %v1931
      %v1963 = vpack.c.bf16 %v1934, %v1933
      %v1964 = vpack.c.bf16 %v1936, %v1935
      %v1965 = vpack.c.bf16 %v1938, %v1937
      %v1966 = vpack.c.bf16 %v1940, %v1939
      %v1967 = vpack.c.bf16 %v1942, %v1941
      %v1968 = vpack.c.bf16 %v1944, %v1943
      %v1969 = vpack.c.bf16 %v1946, %v1945
      %v1970 = vpack.c.bf16 %v1948, %v1947
      %v1971 = vpack.c.bf16 %v1950, %v1949
      %v1972 = vpack.c.bf16 %v1952, %v1951
      %v1973 = vpack.c.bf16 %v1954, %v1953
      %v1974 = vpack.c.bf16 %v1956, %v1955
      %v1975 = vpack.c.bf16 %v1958, %v1957
      %v1976 = vpack.c.bf16 %v1960, %v1959
      %v1977 = vld [vmem:[%s2] sm:$0xf]
      %v1978 = vld [vmem:[%s2 + $0x4] sm:$0xf]
      %v1979 = vld [vmem:[%s2 + $0x8] sm:$0xf]
      %v1980 = vld [vmem:[%s2 + $0xc] sm:$0xf]
      %v1981 = vld [vmem:[%s2 + $0x10] sm:$0xf]
      %v1982 = vld [vmem:[%s2 + $0x14] sm:$0xf]
      %v1983 = vld [vmem:[%s2 + $0x18] sm:$0xf]
      %v1984 = vld [vmem:[%s2 + $0x1c] sm:$0xf]
      %v1985 = vld [vmem:[%s2 + $0x20] sm:$0xf]
      %v1986 = vld [vmem:[%s2 + $0x24] sm:$0xf]
      %v1987 = vld [vmem:[%s2 + $0x28] sm:$0xf]
      %v1988 = vld [vmem:[%s2 + $0x2c] sm:$0xf]
      %v1989 = vld [vmem:[%s3] sm:$0x1]
      %v1991 = vlaneseq
      %v1992 = vshrl.u32 %v1991, 7
      %v1993 = vsub.s32 0, %v1992
      %v1994 = vrot.slane %v1989, %v1993
      %v2008 = vunpack.c.l.b16 %v1977
      %v2009 = vunpack.c.l.b16 %v1978
      %v2010 = vunpack.c.l.b16 %v1979
      %v2011 = vunpack.c.l.b16 %v1980
      %v2012 = vunpack.c.l.b16 %v1981
      %v2013 = vunpack.c.l.b16 %v1982
      %v2014 = vunpack.c.l.b16 %v1983
      %v2015 = vunpack.c.l.b16 %v1984
      %v2016 = vunpack.c.l.b16 %v1985
      %v2017 = vunpack.c.l.b16 %v1986
      %v2018 = vunpack.c.l.b16 %v1987
      %v2019 = vunpack.c.l.b16 %v1988
      %v2020 = vpack.c.b16 %v2009, %v2008
      %v2021 = vpack.c.b16 %v2011, %v2010
      %v2022 = vpack.c.b16 %v2013, %v2012
      %v2023 = vpack.c.b16 %v2015, %v2014
      %v2024 = vpack.c.b16 %v2017, %v2016
      %v2025 = vpack.c.b16 %v2019, %v2018
      %v2033 = vsel %vm1550, %v1961, 0
      %v2036 = vsel %vm1550, %v1962, 0
      %v2039 = vsel %vm1550, %v1963, 0
      %v2042 = vsel %vm1550, %v1964, 0
      %v2045 = vsel %vm1550, %v1965, 0
      %v2048 = vsel %vm1550, %v1966, 0
      %v2051 = vsel %vm1550, %v1967, 0
      %v2054 = vsel %vm1550, %v1968, 0
      %v2057 = vsel %vm1550, %v1969, 0
      %v2060 = vsel %vm1550, %v1970, 0
      %v2063 = vsel %vm1550, %v1971, 0
      %v2066 = vsel %vm1550, %v1972, 0
      %v2069 = vsel %vm1550, %v1973, 0
      %v2072 = vsel %vm1550, %v1974, 0
      %v2075 = vsel %vm1550, %v1975, 0
      %v2078 = vsel %vm1550, %v1976, 0
      %2080 = vmatprep.subr.bf16.mxu0 0
      %2081 = vmatpush1.bf16.msra.mxu0 %v2020
      %2082 = vmatprep.subr.bf16.mxu0 0
      %2083 = vmatpush1.bf16.msra.mxu0 %v2021
      %2084 = vmatprep.subr.bf16.mxu0 0
      %2085 = vmatpush1.bf16.msra.mxu0 %v2022
      %2086 = vmatprep.subr.bf16.mxu0 0
      %2087 = vmatpush1.bf16.msra.mxu0 %v2023
      %2088 = vmatprep.subr.bf16.mxu0 0
      %2089 = vmatpush1.bf16.msra.mxu0 %v2024
      %2090 = vmatprep.subr.bf16.mxu0 0
      %2091 = vmatpush1.bf16.msra.mxu0 %v2025
      %2092 = vmatprep.subr.bf16.mxu0 0
      %2093 = vmatpush1.bf16.msra.mxu0 0
      %2094 = vmatprep.subr.bf16.mxu0 0
      %2095 = vmatpush1.bf16.msra.mxu0 0
      %2096 = vmatprep.subr.bf16.mxu0 0
      %2097 = vmatpush1.bf16.msra.mxu0 0
      %2098 = vmatprep.subr.bf16.mxu0 0
      %2099 = vmatpush1.bf16.msra.mxu0 0
      %2100 = vmatprep.subr.bf16.mxu0 0
      %2101 = vmatpush1.bf16.msra.mxu0 0
      %2102 = vmatprep.subr.bf16.mxu0 0
      %2103 = vmatpush1.bf16.msra.mxu0 0
      %2104 = vmatprep.subr.bf16.mxu0 0
      %2105 = vmatpush1.bf16.msra.mxu0 0
      %2106 = vmatprep.subr.bf16.mxu0 0
      %2107 = vmatpush1.bf16.msra.mxu0 0
      %2108 = vmatprep.subr.bf16.mxu0 0
      %2109 = vmatpush1.bf16.msra.mxu0 0
      %2110 = vmatprep.subr.bf16.mxu0 0
      %2111 = vmatpush1.bf16.msra.mxu0 0
      %2112 = vmatprep.mubr.bf16.mxu0 0
      %2113 = vmatmul.mubr.bf16.gmra.mrb[0].mxu0 %v2033
      %v2114 = vpop.f32.mrb[0].mxu0
      %v2115 = vadd.f32 %v1994, %v2114
      %v2116 = vpop.f32.mrb[0].mxu0
      %v2117 = vpop.f32.mrb[0].mxu0
      %v2118 = vadd.f32 %v1994, %v2117
      %v2119 = vpop.f32.mrb[0].mxu0
      %2120 = vmatprep.mubr.bf16.mxu0 0
      %2121 = vmatmul.mubr.bf16.gmra.mrb[0].mxu0 %v2036
      %v2122 = vpop.f32.mrb[0].mxu0
      %v2123 = vadd.f32 %v1994, %v2122
      %v2124 = vpop.f32.mrb[0].mxu0
      %v2125 = vpop.f32.mrb[0].mxu0
      %v2126 = vadd.f32 %v1994, %v2125
      %v2127 = vpop.f32.mrb[0].mxu0
      %2128 = vmatprep.mubr.bf16.mxu0 0
      %2129 = vmatmul.mubr.bf16.gmra.mrb[0].mxu0 %v2039
      %v2130 = vpop.f32.mrb[0].mxu0
      %v2131 = vadd.f32 %v1994, %v2130
      %v2132 = vpop.f32.mrb[0].mxu0
      %v2133 = vpop.f32.mrb[0].mxu0
      %v2134 = vadd.f32 %v1994, %v2133
      %v2135 = vpop.f32.mrb[0].mxu0
      %2136 = vmatprep.mubr.bf16.mxu0 0
      %2137 = vmatmul.mubr.bf16.gmra.mrb[0].mxu0 %v2042
      %v2138 = vpop.f32.mrb[0].mxu0
      %v2139 = vadd.f32 %v1994, %v2138
      %v2140 = vpop.f32.mrb[0].mxu0
      %v2141 = vpop.f32.mrb[0].mxu0
      %v2142 = vadd.f32 %v1994, %v2141
      %v2143 = vpop.f32.mrb[0].mxu0
      %2144 = vmatprep.mubr.bf16.mxu0 0
      %2145 = vmatmul.mubr.bf16.gmra.mrb[0].mxu0 %v2045
      %v2146 = vpop.f32.mrb[0].mxu0
      %v2147 = vadd.f32 %v1994, %v2146
      %v2148 = vpop.f32.mrb[0].mxu0
      %v2149 = vpop.f32.mrb[0].mxu0
      %v2150 = vadd.f32 %v1994, %v2149
      %v2151 = vpop.f32.mrb[0].mxu0
      %2152 = vmatprep.mubr.bf16.mxu0 0
      %2153 = vmatmul.mubr.bf16.gmra.mrb[0].mxu0 %v2048
      %v2154 = vpop.f32.mrb[0].mxu0
      %v2155 = vadd.f32 %v1994, %v2154
      %v2156 = vpop.f32.mrb[0].mxu0
      %v2157 = vpop.f32.mrb[0].mxu0
      %v2158 = vadd.f32 %v1994, %v2157
      %v2159 = vpop.f32.mrb[0].mxu0
      %2160 = vmatprep.mubr.bf16.mxu0 0
      %2161 = vmatmul.mubr.bf16.gmra.mrb[0].mxu0 %v2051
      %v2162 = vpop.f32.mrb[0].mxu0
      %v2163 = vadd.f32 %v1994, %v2162
      %v2164 = vpop.f32.mrb[0].mxu0
      %v2165 = vpop.f32.mrb[0].mxu0
      %v2166 = vadd.f32 %v1994, %v2165
      %v2167 = vpop.f32.mrb[0].mxu0
      %2168 = vmatprep.mubr.bf16.mxu0 0
      %2169 = vmatmul.mubr.bf16.gmra.mrb[0].mxu0 %v2054
      %v2170 = vpop.f32.mrb[0].mxu0
      %v2171 = vadd.f32 %v1994, %v2170
      %v2172 = vpop.f32.mrb[0].mxu0
      %v2173 = vpop.f32.mrb[0].mxu0
      %v2174 = vadd.f32 %v1994, %v2173
      %v2175 = vpop.f32.mrb[0].mxu0
      %2176 = vmatprep.mubr.bf16.mxu0 0
      %2177 = vmatmul.mubr.bf16.gmra.mrb[0].mxu0 %v2057
      %v2178 = vpop.f32.mrb[0].mxu0
      %v2179 = vadd.f32 %v1994, %v2178
      %v2180 = vpop.f32.mrb[0].mxu0
      %v2181 = vpop.f32.mrb[0].mxu0
      %v2182 = vadd.f32 %v1994, %v2181
      %v2183 = vpop.f32.mrb[0].mxu0
      %2184 = vmatprep.mubr.bf16.mxu0 0
      %2185 = vmatmul.mubr.bf16.gmra.mrb[0].mxu0 %v2060
      %v2186 = vpop.f32.mrb[0].mxu0
      %v2187 = vadd.f32 %v1994, %v2186
      %v2188 = vpop.f32.mrb[0].mxu0
      %v2189 = vpop.f32.mrb[0].mxu0
      %v2190 = vadd.f32 %v1994, %v2189
      %v2191 = vpop.f32.mrb[0].mxu0
      %2192 = vmatprep.mubr.bf16.mxu0 0
      %2193 = vmatmul.mubr.bf16.gmra.mrb[0].mxu0 %v2063
      %v2194 = vpop.f32.mrb[0].mxu0
      %v2195 = vadd.f32 %v1994, %v2194
      %v2196 = vpop.f32.mrb[0].mxu0
      %v2197 = vpop.f32.mrb[0].mxu0
      %v2198 = vadd.f32 %v1994, %v2197
      %v2199 = vpop.f32.mrb[0].mxu0
      %2200 = vmatprep.mubr.bf16.mxu0 0
      %2201 = vmatmul.mubr.bf16.gmra.mrb[0].mxu0 %v2066
      %v2202 = vpop.f32.mrb[0].mxu0
      %v2203 = vadd.f32 %v1994, %v2202
      %v2204 = vpop.f32.mrb[0].mxu0
      %v2205 = vpop.f32.mrb[0].mxu0
      %v2206 = vadd.f32 %v1994, %v2205
      %v2207 = vpop.f32.mrb[0].mxu0
      %2208 = vmatprep.mubr.bf16.mxu0 0
      %2209 = vmatmul.mubr.bf16.gmra.mrb[0].mxu0 %v2069
      %v2210 = vpop.f32.mrb[0].mxu0
      %v2211 = vadd.f32 %v1994, %v2210
      %v2212 = vpop.f32.mrb[0].mxu0
      %v2213 = vpop.f32.mrb[0].mxu0
      %v2214 = vadd.f32 %v1994, %v2213
      %v2215 = vpop.f32.mrb[0].mxu0
      %2216 = vmatprep.mubr.bf16.mxu0 0
      %2217 = vmatmul.mubr.bf16.gmra.mrb[0].mxu0 %v2072
      %v2218 = vpop.f32.mrb[0].mxu0
      %v2219 = vadd.f32 %v1994, %v2218
      %v2220 = vpop.f32.mrb[0].mxu0
      %v2221 = vpop.f32.mrb[0].mxu0
      %v2222 = vadd.f32 %v1994, %v2221
      %v2223 = vpop.f32.mrb[0].mxu0
      %2224 = vmatprep.mubr.bf16.mxu0 0
      %2225 = vmatmul.mubr.bf16.gmra.mrb[0].mxu0 %v2075
      %v2226 = vpop.f32.mrb[0].mxu0
      %v2227 = vadd.f32 %v1994, %v2226
      %v2228 = vpop.f32.mrb[0].mxu0
      %v2229 = vpop.f32.mrb[0].mxu0
      %v2230 = vadd.f32 %v1994, %v2229
      %v2231 = vpop.f32.mrb[0].mxu0
      %2232 = vmatprep.mubr.bf16.mxu0 0
      %2233 = vmatmul.mubr.bf16.gmra.mrb[0].mxu0 %v2078
      %v2234 = vpop.f32.mrb[0].mxu0
      %v2235 = vadd.f32 %v1994, %v2234
      %v2236 = vpop.f32.mrb[0].mxu0
      %v2237 = vpop.f32.mrb[0].mxu0
      %v2238 = vadd.f32 %v1994, %v2237
      %v2239 = vpop.f32.mrb[0].mxu0
      %2240 = vdwg.mxu0
      %v2241 = vlaneseq
      %v2242 = vand.u32 %v2241, 127
      %v2243 = vxor.u32 %v2115, 2147483648
      %v2244 = vxor.u32 %v2118, 2147483648
      %v2245 = vxor.u32 %v2123, 2147483648
      %v2246 = vxor.u32 %v2126, 2147483648
      %v2247 = vxor.u32 %v2131, 2147483648
      %v2248 = vxor.u32 %v2134, 2147483648
      %v2249 = vxor.u32 %v2139, 2147483648
      %v2250 = vxor.u32 %v2142, 2147483648
      %v2251 = vxor.u32 %v2147, 2147483648
      %v2252 = vxor.u32 %v2150, 2147483648
      %v2253 = vxor.u32 %v2155, 2147483648
      %v2254 = vxor.u32 %v2158, 2147483648
      %v2255 = vxor.u32 %v2163, 2147483648
      %v2256 = vxor.u32 %v2166, 2147483648
      %v2257 = vxor.u32 %v2171, 2147483648
      %v2258 = vxor.u32 %v2174, 2147483648
      %v2259 = vxor.u32 %v2179, 2147483648
      %v2260 = vxor.u32 %v2182, 2147483648
      %v2261 = vxor.u32 %v2187, 2147483648
      %v2262 = vxor.u32 %v2190, 2147483648
      %v2263 = vxor.u32 %v2195, 2147483648
      %v2264 = vxor.u32 %v2198, 2147483648
      %v2265 = vxor.u32 %v2203, 2147483648
      %v2266 = vxor.u32 %v2206, 2147483648
      %v2267 = vxor.u32 %v2211, 2147483648
      %v2268 = vxor.u32 %v2214, 2147483648
      %v2269 = vxor.u32 %v2219, 2147483648
      %v2270 = vxor.u32 %v2222, 2147483648
      %v2271 = vxor.u32 %v2227, 2147483648
      %v2272 = vxor.u32 %v2230, 2147483648
      %v2273 = vxor.u32 %v2235, 2147483648
      %v2274 = vxor.u32 %v2238, 2147483648
      %v2275 = vmul.f32 %v2243, 1.442695
      %v2276 = vpow.pop %v2275
      %v2277 = vmul.f32 %v2244, 1.442695
      %v2278 = vpow.pop %v2277
      %v2279 = vmul.f32 %v2245, 1.442695
      %v2280 = vpow.pop %v2279
      %v2281 = vmul.f32 %v2246, 1.442695
      %v2282 = vpow.pop %v2281
      %v2283 = vmul.f32 %v2247, 1.442695
      %v2284 = vpow.pop %v2283
      %v2285 = vmul.f32 %v2248, 1.442695
      %v2286 = vpow.pop %v2285
      %v2287 = vmul.f32 %v2249, 1.442695
      %v2288 = vpow.pop %v2287
      %v2289 = vmul.f32 %v2250, 1.442695
      %v2290 = vpow.pop %v2289
      %v2291 = vmul.f32 %v2251, 1.442695
      %v2292 = vpow.pop %v2291
      %v2293 = vmul.f32 %v2252, 1.442695
      %v2294 = vpow.pop %v2293
      %v2295 = vmul.f32 %v2253, 1.442695
      %v2296 = vpow.pop %v2295
      %v2297 = vmul.f32 %v2254, 1.442695
      %v2298 = vpow.pop %v2297
      %v2299 = vmul.f32 %v2255, 1.442695
      %v2300 = vpow.pop %v2299
      %v2301 = vmul.f32 %v2256, 1.442695
      %v2302 = vpow.pop %v2301
      %v2303 = vmul.f32 %v2257, 1.442695
      %v2304 = vpow.pop %v2303
      %v2305 = vmul.f32 %v2258, 1.442695
      %v2306 = vpow.pop %v2305
      %v2307 = vmul.f32 %v2259, 1.442695
      %v2308 = vpow.pop %v2307
      %v2309 = vmul.f32 %v2260, 1.442695
      %v2310 = vpow.pop %v2309
      %v2311 = vmul.f32 %v2261, 1.442695
      %v2312 = vpow.pop %v2311
      %v2313 = vmul.f32 %v2262, 1.442695
      %v2314 = vpow.pop %v2313
      %v2315 = vmul.f32 %v2263, 1.442695
      %v2316 = vpow.pop %v2315
      %v2317 = vmul.f32 %v2264, 1.442695
      %v2318 = vpow.pop %v2317
      %v2319 = vmul.f32 %v2265, 1.442695
      %v2320 = vpow.pop %v2319
      %v2321 = vmul.f32 %v2266, 1.442695
      %v2322 = vpow.pop %v2321
      %v2323 = vmul.f32 %v2267, 1.442695
      %v2324 = vpow.pop %v2323
      %v2325 = vmul.f32 %v2268, 1.442695
      %v2326 = vpow.pop %v2325
      %v2327 = vmul.f32 %v2269, 1.442695
      %v2328 = vpow.pop %v2327
      %v2329 = vmul.f32 %v2270, 1.442695
      %v2330 = vpow.pop %v2329
      %v2331 = vmul.f32 %v2271, 1.442695
      %v2332 = vpow.pop %v2331
      %v2333 = vmul.f32 %v2272, 1.442695
      %v2334 = vpow.pop %v2333
      %v2335 = vmul.f32 %v2273, 1.442695
      %v2336 = vpow.pop %v2335
      %v2337 = vmul.f32 %v2274, 1.442695
      %v2338 = vpow.pop %v2337
      %v2339 = vadd.f32 %v2276, 1.0
      %v2340 = vadd.f32 %v2278, 1.0
      %v2341 = vadd.f32 %v2280, 1.0
      %v2342 = vadd.f32 %v2282, 1.0
      %v2343 = vadd.f32 %v2284, 1.0
      %v2344 = vadd.f32 %v2286, 1.0
      %v2345 = vadd.f32 %v2288, 1.0
      %v2346 = vadd.f32 %v2290, 1.0
      %v2347 = vadd.f32 %v2292, 1.0
      %v2348 = vadd.f32 %v2294, 1.0
      %v2349 = vadd.f32 %v2296, 1.0
      %v2350 = vadd.f32 %v2298, 1.0
      %v2351 = vadd.f32 %v2300, 1.0
      %v2352 = vadd.f32 %v2302, 1.0
      %v2353 = vadd.f32 %v2304, 1.0
      %v2354 = vadd.f32 %v2306, 1.0
      %v2355 = vadd.f32 %v2308, 1.0
      %v2356 = vadd.f32 %v2310, 1.0
      %v2357 = vadd.f32 %v2312, 1.0
      %v2358 = vadd.f32 %v2314, 1.0
      %v2359 = vadd.f32 %v2316, 1.0
      %v2360 = vadd.f32 %v2318, 1.0
      %v2361 = vadd.f32 %v2320, 1.0
      %v2362 = vadd.f32 %v2322, 1.0
      %v2363 = vadd.f32 %v2324, 1.0
      %v2364 = vadd.f32 %v2326, 1.0
      %v2365 = vadd.f32 %v2328, 1.0
      %v2366 = vadd.f32 %v2330, 1.0
      %v2367 = vadd.f32 %v2332, 1.0
      %v2368 = vadd.f32 %v2334, 1.0
      %v2369 = vadd.f32 %v2336, 1.0
      %v2370 = vadd.f32 %v2338, 1.0
      %v2371 = vrcp.pop %v2339
      %v2372 = vmul.f32 1.0, %v2371
      %v2373 = vrcp.pop %v2340
      %v2374 = vmul.f32 1.0, %v2373
      %v2375 = vrcp.pop %v2341
      %v2376 = vmul.f32 1.0, %v2375
      %v2377 = vrcp.pop %v2342
      %v2378 = vmul.f32 1.0, %v2377
      %v2379 = vrcp.pop %v2343
      %v2380 = vmul.f32 1.0, %v2379
      %v2381 = vrcp.pop %v2344
      %v2382 = vmul.f32 1.0, %v2381
      %v2383 = vrcp.pop %v2345
      %v2384 = vmul.f32 1.0, %v2383
      %v2385 = vrcp.pop %v2346
      %v2386 = vmul.f32 1.0, %v2385
      %v2387 = vrcp.pop %v2347
      %v2388 = vmul.f32 1.0, %v2387
      %v2389 = vrcp.pop %v2348
      %v2390 = vmul.f32 1.0, %v2389
      %v2391 = vrcp.pop %v2349
      %v2392 = vmul.f32 1.0, %v2391
      %v2393 = vrcp.pop %v2350
      %v2394 = vmul.f32 1.0, %v2393
      %v2395 = vrcp.pop %v2351
      %v2396 = vmul.f32 1.0, %v2395
      %v2397 = vrcp.pop %v2352
      %v2398 = vmul.f32 1.0, %v2397
      %v2399 = vrcp.pop %v2353
      %v2400 = vmul.f32 1.0, %v2399
      %v2401 = vrcp.pop %v2354
      %v2402 = vmul.f32 1.0, %v2401
      %v2403 = vrcp.pop %v2355
      %v2404 = vmul.f32 1.0, %v2403
      %v2405 = vrcp.pop %v2356
      %v2406 = vmul.f32 1.0, %v2405
      %v2407 = vrcp.pop %v2357
      %v2408 = vmul.f32 1.0, %v2407
      %v2409 = vrcp.pop %v2358
      %v2410 = vmul.f32 1.0, %v2409
      %v2411 = vrcp.pop %v2359
      %v2412 = vmul.f32 1.0, %v2411
      %v2413 = vrcp.pop %v2360
      %v2414 = vmul.f32 1.0, %v2413
      %v2415 = vrcp.pop %v2361
      %v2416 = vmul.f32 1.0, %v2415
      %v2417 = vrcp.pop %v2362
      %v2418 = vmul.f32 1.0, %v2417
      %v2419 = vrcp.pop %v2363
      %v2420 = vmul.f32 1.0, %v2419
      %v2421 = vrcp.pop %v2364
      %v2422 = vmul.f32 1.0, %v2421
      %v2423 = vrcp.pop %v2365
      %v2424 = vmul.f32 1.0, %v2423
      %v2425 = vrcp.pop %v2366
      %v2426 = vmul.f32 1.0, %v2425
      %v2427 = vrcp.pop %v2367
      %v2428 = vmul.f32 1.0, %v2427
      %v2429 = vrcp.pop %v2368
      %v2430 = vmul.f32 1.0, %v2429
      %v2431 = vrcp.pop %v2369
      %v2432 = vmul.f32 1.0, %v2431
      %v2433 = vrcp.pop %v2370
      %v2434 = vmul.f32 1.0, %v2433
      %v2435 = vmax.f32 %v2372, 0.0001
      %v2436 = vmax.f32 %v2374, 0.0001
      %v2437 = vmax.f32 %v2376, 0.0001
      %v2438 = vmax.f32 %v2378, 0.0001
      %v2439 = vmax.f32 %v2380, 0.0001
      %v2440 = vmax.f32 %v2382, 0.0001
      %v2441 = vmax.f32 %v2384, 0.0001
      %v2442 = vmax.f32 %v2386, 0.0001
      %v2443 = vmax.f32 %v2388, 0.0001
      %v2444 = vmax.f32 %v2390, 0.0001
      %v2445 = vmax.f32 %v2392, 0.0001
      %v2446 = vmax.f32 %v2394, 0.0001
      %v2447 = vmax.f32 %v2396, 0.0001
      %v2448 = vmax.f32 %v2398, 0.0001
      %v2449 = vmax.f32 %v2400, 0.0001
      %v2450 = vmax.f32 %v2402, 0.0001
      %v2451 = vmax.f32 %v2404, 0.0001
      %v2452 = vmax.f32 %v2406, 0.0001
      %v2453 = vmax.f32 %v2408, 0.0001
      %v2454 = vmax.f32 %v2410, 0.0001
      %v2455 = vmax.f32 %v2412, 0.0001
      %v2456 = vmax.f32 %v2414, 0.0001
      %v2457 = vmax.f32 %v2416, 0.0001
      %v2458 = vmax.f32 %v2418, 0.0001
      %v2459 = vmax.f32 %v2420, 0.0001
      %v2460 = vmax.f32 %v2422, 0.0001
      %v2461 = vmax.f32 %v2424, 0.0001
      %v2462 = vmax.f32 %v2426, 0.0001
      %v2463 = vmax.f32 %v2428, 0.0001
      %v2464 = vmax.f32 %v2430, 0.0001
      %v2465 = vmax.f32 %v2432, 0.0001
      %v2466 = vmax.f32 %v2434, 0.0001
      %v2467 = vmin.f32 %v2435, 0.9999
      %v2468 = vmin.f32 %v2436, 0.9999
      %v2469 = vmin.f32 %v2437, 0.9999
      %v2470 = vmin.f32 %v2438, 0.9999
      %v2471 = vmin.f32 %v2439, 0.9999
      %v2472 = vmin.f32 %v2440, 0.9999
      %v2473 = vmin.f32 %v2441, 0.9999
      %v2474 = vmin.f32 %v2442, 0.9999
      %v2475 = vmin.f32 %v2443, 0.9999
      %v2476 = vmin.f32 %v2444, 0.9999
      %v2477 = vmin.f32 %v2445, 0.9999
      %v2478 = vmin.f32 %v2446, 0.9999
      %v2479 = vmin.f32 %v2447, 0.9999
      %v2480 = vmin.f32 %v2448, 0.9999
      %v2481 = vmin.f32 %v2449, 0.9999
      %v2482 = vmin.f32 %v2450, 0.9999
      %v2483 = vmin.f32 %v2451, 0.9999
      %v2484 = vmin.f32 %v2452, 0.9999
      %v2485 = vmin.f32 %v2453, 0.9999
      %v2486 = vmin.f32 %v2454, 0.9999
      %v2487 = vmin.f32 %v2455, 0.9999
      %v2488 = vmin.f32 %v2456, 0.9999
      %v2489 = vmin.f32 %v2457, 0.9999
      %v2490 = vmin.f32 %v2458, 0.9999
      %v2491 = vmin.f32 %v2459, 0.9999
      %v2492 = vmin.f32 %v2460, 0.9999
      %v2493 = vmin.f32 %v2461, 0.9999
      %v2494 = vmin.f32 %v2462, 0.9999
      %v2495 = vmin.f32 %v2463, 0.9999
      %v2496 = vmin.f32 %v2464, 0.9999
      %v2497 = vmin.f32 %v2465, 0.9999
      %v2498 = vmin.f32 %v2466, 0.9999
      %vm2499 = vcmp.lt.s32.totalorder %v2242, 13
      %v2500 = vsel %vm2499, %v2467, %v2115
      %v2501 = vsel %vm2499, %v2468, %v2118
      %v2502 = vsel %vm2499, %v2469, %v2123
      %v2503 = vsel %vm2499, %v2470, %v2126
      %v2504 = vsel %vm2499, %v2471, %v2131
      %v2505 = vsel %vm2499, %v2472, %v2134
      %v2506 = vsel %vm2499, %v2473, %v2139
      %v2507 = vsel %vm2499, %v2474, %v2142
      %v2508 = vsel %vm2499, %v2475, %v2147
      %v2509 = vsel %vm2499, %v2476, %v2150
      %v2510 = vsel %vm2499, %v2477, %v2155
      %v2511 = vsel %vm2499, %v2478, %v2158
      %v2512 = vsel %vm2499, %v2479, %v2163
      %v2513 = vsel %vm2499, %v2480, %v2166
      %v2514 = vsel %vm2499, %v2481, %v2171
      %v2515 = vsel %vm2499, %v2482, %v2174
      %v2516 = vsel %vm2499, %v2483, %v2179
      %v2517 = vsel %vm2499, %v2484, %v2182
      %v2518 = vsel %vm2499, %v2485, %v2187
      %v2519 = vsel %vm2499, %v2486, %v2190
      %v2520 = vsel %vm2499, %v2487, %v2195
      %v2521 = vsel %vm2499, %v2488, %v2198
      %v2522 = vsel %vm2499, %v2489, %v2203
      %v2523 = vsel %vm2499, %v2490, %v2206
      %v2524 = vsel %vm2499, %v2491, %v2211
      %v2525 = vsel %vm2499, %v2492, %v2214
      %v2526 = vsel %vm2499, %v2493, %v2219
      %v2527 = vsel %vm2499, %v2494, %v2222
      %v2528 = vsel %vm2499, %v2495, %v2227
      %v2529 = vsel %vm2499, %v2496, %v2230
      %v2530 = vsel %vm2499, %v2497, %v2235
      %v2531 = vsel %vm2499, %v2498, %v2238
      %2532 = vxpose.xlu0.b32.start [1/16] %v2500, 128
      %2533 = vxpose.xlu0.b32.cont [2/16] %v2501, 128
      %2534 = vxpose.xlu0.b32.cont [3/16] %v2502, 128
      %2535 = vxpose.xlu0.b32.cont [4/16] %v2503, 128
      %2536 = vxpose.xlu0.b32.cont [5/16] %v2504, 128
      %2537 = vxpose.xlu0.b32.cont [6/16] %v2505, 128
      %2538 = vxpose.xlu0.b32.cont [7/16] %v2506, 128
      %2539 = vxpose.xlu0.b32.cont [8/16] %v2507, 128
      %2540 = vxpose.xlu0.b32.cont [9/16] %v2508, 128
      %2541 = vxpose.xlu0.b32.cont [10/16] %v2509, 128
      %2542 = vxpose.xlu0.b32.cont [11/16] %v2510, 128
      %2543 = vxpose.xlu0.b32.cont [12/16] %v2511, 128
      %2544 = vxpose.xlu0.b32.cont [13/16] %v2512, 128
      %2545 = vxpose.xlu0.b32.cont [14/16] %v2513, 128
      %2546 = vxpose.xlu0.b32.cont [15/16] %v2514, 128
      %2547 = vxpose.xlu0.b32.end [16/16] %v2515, 128
      %v2548 = vpop.trf.xlu0
      %v2549 = vpop.trf.xlu0
      %v2550 = vpop.trf.xlu0
      %v2551 = vpop.trf.xlu0
      %v2552 = vpop.trf.xlu0
      %v2553 = vpop.trf.xlu0
      %v2554 = vpop.trf.xlu0
      %v2555 = vpop.trf.xlu0
      %v2556 = vpop.trf.xlu0
      %v2557 = vpop.trf.xlu0
      %v2558 = vpop.trf.xlu0
      %v2559 = vpop.trf.xlu0
      %v2560 = vpop.trf.xlu0
      %v2561 = vpop.trf.xlu0
      %v2562 = vpop.trf.xlu0
      %v2563 = vpop.trf.xlu0
      %2564 = vxpose.xlu0.b32.start [1/16] %v2516, 128
      %2565 = vxpose.xlu0.b32.cont [2/16] %v2517, 128
      %2566 = vxpose.xlu0.b32.cont [3/16] %v2518, 128
      %2567 = vxpose.xlu0.b32.cont [4/16] %v2519, 128
      %2568 = vxpose.xlu0.b32.cont [5/16] %v2520, 128
      %2569 = vxpose.xlu0.b32.cont [6/16] %v2521, 128
      %2570 = vxpose.xlu0.b32.cont [7/16] %v2522, 128
      %2571 = vxpose.xlu0.b32.cont [8/16] %v2523, 128
      %2572 = vxpose.xlu0.b32.cont [9/16] %v2524, 128
      %2573 = vxpose.xlu0.b32.cont [10/16] %v2525, 128
      %2574 = vxpose.xlu0.b32.cont [11/16] %v2526, 128
      %2575 = vxpose.xlu0.b32.cont [12/16] %v2527, 128
      %2576 = vxpose.xlu0.b32.cont [13/16] %v2528, 128
      %2577 = vxpose.xlu0.b32.cont [14/16] %v2529, 128
      %2578 = vxpose.xlu0.b32.cont [15/16] %v2530, 128
      %2579 = vxpose.xlu0.b32.end [16/16] %v2531, 128
      %v2580 = vpop.trf.xlu0
      %v2581 = vpop.trf.xlu0
      %v2582 = vpop.trf.xlu0
      %v2583 = vpop.trf.xlu0
      %v2584 = vpop.trf.xlu0
      %v2585 = vpop.trf.xlu0
      %v2586 = vpop.trf.xlu0
      %v2587 = vpop.trf.xlu0
      %v2588 = vpop.trf.xlu0
      %v2589 = vpop.trf.xlu0
      %v2590 = vpop.trf.xlu0
      %v2591 = vpop.trf.xlu0
      %v2592 = vpop.trf.xlu0
      %v2593 = vpop.trf.xlu0
      %v2594 = vpop.trf.xlu0
      %v2595 = vpop.trf.xlu0
      %2596 = vst [vmem:[%s197] sm:$0xff] %v2548
      %2597 = vst [vmem:[%s197 + $0x8] sm:$0xff] %v2580
      %2598 = vst [vmem:[%s197 + $0x10] sm:$0xff] %v2549
      %2599 = vst [vmem:[%s197 + $0x18] sm:$0xff] %v2581
      %2600 = vst [vmem:[%s197 + $0x20] sm:$0x7f] %v2550
      %2601 = vst [vmem:[%s197 + $0x28] sm:$0x7f] %v2582
      %p2602 = scmp.lt.s32.totalorder %s15, 1
      %s2603 = scalar_select %p2602, %s15, 1
      %s2604 = smul.addr %s2603, 6
      %s2605 = smul.addr %s2604, 8
      %s2606 = scalar_lea.vmem %s4, %s2605
      // Predicated region
      $region37: #{_lambda_.1} parent=35 // pred_check
        %p2607 = pneg %p122
      $region38: #{_lambda_.1} parent=35 // pred_check_branch
        %2609 = sbr.rel (%p2607) target = $region40
      $region39: #{_lambda_.1} parent=35 // pred_region
        _
      $region40: #{_lambda_.1} parent=35 // pred_fallthru
        _
    $region36: #{_lambda_.1} parent=5 // pred_fallthru
      _
    %p2610 = scmp.le.s32.totalorder 2, %s10
    // Predicated region
    $region41: #{_lambda_.1} parent=5 // pred_check
      %p2611 = pneg %p2610
    $region42: #{_lambda_.1} parent=5 // pred_check_branch
      %2613 = sbr.rel (%p2611) target = $region44
    $region43: #{_lambda_.1} parent=5 // pred_region
      %s2614 = ssub.s32 %s10, 2
      // Predicated region
      $region45: #{_lambda_.1} parent=43 // pred_check
        %p2615 = pneg %p128
      $region46: #{_lambda_.1} parent=43 // pred_check_branch
        %2617 = sbr.rel (%p2615) target = $region48
      $region47: #{_lambda_.1} parent=43 // pred_region
        %p2618 = scmp.lt.s32.totalorder %s16, 1
        %s2619 = scalar_select %p2618, %s16, 1
        %s2620 = smul.addr %s2619, 6
        %s2621 = smul.addr %s2620, 8
        %s2622 = scalar_lea.vmem %s4, %s2621
      $region48: #{_lambda_.1} parent=43 // pred_fallthru
        _
    $region44: #{_lambda_.1} parent=5 // pred_fallthru
      _
  $region6: #{_lambda_.1} parent=0 // loop_footer
    %s14 = sadd.s32 1, %s10
  $region7: #{_lambda_.1} parent=0 // loop_footer_branch
    %9 = sbr.rel target = $region3
  $region8: #{_lambda_.1} parent=0 // loop_exit
    _

</llo_original>
